<compile_context>
chip_gen: v5e
topology: v5e:2x2
jax: 0.10.0
libtpu: 0.0.40
codegen_flags: <defaults>
</compile_context>

<pallas_src>
import jax
import jax.numpy as jnp
from jax.experimental import pallas as pl
from jax.experimental.pallas import tpu as pltpu


# -----------------------------------------------------------------------------
# Pallas kernel: one fused decode step.  All operands are small full-array VMEM
# blocks (no grid).  Concatenations from the PyTorch code are realized as split
# matmuls over pre-sliced weights (same math, no in-kernel concat).
# TODO(synk): for realistic vocab sizes, tile the Vext axis with a grid +
#             online softmax (mandatory on v7x's 64 MiB VMEM) and feed bf16
#             weights; at these toy shapes everything fits one VMEM block.
# -----------------------------------------------------------------------------
def _decoder_kernel(
    # per-step data
    y_ref, x_ref, enc_ref, encf_ref, ids_ref, cov_ref, ctx_ref, h_ref, c_ref,
    # x_c_i
    w_xci_y, w_xci_c, b_xci,
    # fused LSTM (PyTorch gate order i,f,g,o packed along the 4H lane axis)
    w_ih, w_hh, b_lstm,
    # attention
    w_ws_h, w_ws_c, b_ws, w_wc, w_v,
    # vocab distribution (fc2 pre-padded to the lane-padded extended vocab)
    w_fc1_ctx, w_fc1_h, b_fc1, w_fc2, b_fc2,
    # p_gen
    wp_ctx, wp_h, wp_c, wp_x,
    # outputs
    p_ref, h_out, c_out, ctx_out, cov_out,
):
    f32 = jnp.float32
    B, L, _ = enc_ref.shape
    H = h_ref.shape[-1]
    Vp = p_ref.shape[-1]

    y = y_ref[...]                   # [B, E]   teacher-forcing embedding (y.squeeze(1))
    x_emb = x_ref[...]               # [B, E]   decoder input embedding (x.squeeze(1))
    ctx_prev = ctx_ref[...]          # [B, 2H]  previous context vector
    h0 = h_ref[...]                  # [B, H]
    c0 = c_ref[...]                  # [B, H]
    cov = cov_ref[...]               # [B, L]

    # ---- lstm_compute: x = x_c_i(cat(y, context_t)) as two split matmuls ----
    x_lstm = (jnp.dot(y, w_xci_y[...], preferred_element_type=f32)
              + jnp.dot(ctx_prev, w_xci_c[...], preferred_element_type=f32)
              + b_xci[...])                                        # [B, E]

    # ---- single-step LSTM cell: ONE fused [B,4H] gate tile (4H = 128 lanes) --
    gates = (jnp.dot(x_lstm, w_ih[...], preferred_element_type=f32)
             + jnp.dot(h0, w_hh[...], preferred_element_type=f32)
             + b_lstm[...])                                        # [B, 4H]
    i_g = jax.nn.sigmoid(gates[:, 0 * H:1 * H])
    f_g = jax.nn.sigmoid(gates[:, 1 * H:2 * H])
    g_g = jnp.tanh(gates[:, 2 * H:3 * H])
    o_g = jax.nn.sigmoid(gates[:, 3 * H:4 * H])
    c_t = f_g * c0 + i_g * g_g       # decoder_cell_t   [B, H]
    h_t = o_g * jnp.tanh(c_t)        # decoder_state_t  [B, H]

    # ---- attention_dist_get (coverage); enc_feat = W_h(enc) is precomputed ---
    enc = enc_ref[...]                                             # [B, L, 2H]
    dec_feat = (jnp.dot(h_t, w_ws_h[...], preferred_element_type=f32)
                + jnp.dot(c_t, w_ws_c[...], preferred_element_type=f32)
                + b_ws[...])                                       # W_s(cat(h,c)) [B, A]
    e_t = jnp.tanh(encf_ref[...] + dec_feat[:, None, :]
                   + cov[:, :, None] * w_wc[...])                  # [B, L, A]
    scores = jnp.sum(e_t * w_v[...], axis=-1)                      # v(e_t) -> [B, L]
    scores = scores - jnp.max(scores, axis=-1, keepdims=True)
    ex = jnp.exp(scores)
    attn = ex * pl.reciprocal(jnp.sum(ex, axis=-1, keepdims=True),
                              approx=True)                         # softmax over L

    # ---- context_vec_get: bmm(attn, enc) as broadcast + sublane reduce ------
    context = jnp.sum(attn[:, :, None] * enc, axis=1)              # [B, 2H]

    # ---- vocab_dist_get over the lane-padded extended vocab -----------------
    fc1 = (jnp.dot(context, w_fc1_ctx[...], preferred_element_type=f32)
           + jnp.dot(h_t, w_fc1_h[...], preferred_element_type=f32)
           + b_fc1[...])                                           # [B, 2H]
    logits = jnp.dot(fc1, w_fc2[...], preferred_element_type=f32) + b_fc2[...]
    # padded columns carry -1e9 bias -> exp underflows to exactly 0 in f32,
    # so softmax over Vp == softmax over V with zeros appended.
    logits = logits - jnp.max(logits, axis=-1, keepdims=True)
    el = jnp.exp(logits)
    p_vocab = el * pl.reciprocal(jnp.sum(el, axis=-1, keepdims=True),
                                 approx=True)                      # [B, Vp]

    # ---- gen_prob_get: sigmoid(p_gen_fc(cat(context, cat(h,c), x))) ---------
    pg_logit = (jnp.sum(context * wp_ctx[...], axis=-1, keepdims=True)
                + jnp.sum(h_t * wp_h[...] + c_t * wp_c[...], axis=-1,
                          keepdims=True)
                + jnp.sum(x_emb * wp_x[...], axis=-1, keepdims=True))
    p_gen = jax.nn.sigmoid(pg_logit)                               # [B, 1]

    attn_w = (1.0 - p_gen) * attn                                  # [B, L]
    p_out = p_gen * p_vocab                                        # [B, Vp]

    # ---- scatter_add(1, ids, attn_w): fused 3-D compare + sublane reduce ----
    ids = ids_ref[...]                                             # [B, L] int32
    vocab_iota = jax.lax.broadcasted_iota(jnp.int32, (B, L, Vp), 2)
    scat = jnp.where(vocab_iota == ids[:, :, None], attn_w[:, :, None], 0.0)
    p_out = p_out + jnp.sum(scat, axis=1)

    p_ref[...] = p_out
    h_out[...] = h_t
    c_out[...] = c_t
    ctx_out[...] = context
    cov_out[...] = cov + attn


# -----------------------------------------------------------------------------
# Parameter construction (deterministic, PyTorch weight conventions [out, in])
# -----------------------------------------------------------------------------
def init_torch_style_params(key, vocab_size, hidden_size, embw_size, attention_size):
    H, E, A, V = hidden_size, embw_size, attention_size, vocab_size
    ks = iter(jax.random.split(key, 24))

    def nrm(shape, scale=0.1):
        return scale * jax.random.normal(next(ks), shape, jnp.float32)

    return dict(
        xci_w=nrm((E, 2 * H + E)), xci_b=nrm((E,)),
        w_ih=nrm((4 * H, E)), w_hh=nrm((4 * H, H)),
        b_ih=nrm((4 * H,)), b_hh=nrm((4 * H,)),
        ws_w=nrm((A, 2 * H)), ws_b=nrm((A,)),
        wh_w=nrm((A, 2 * H)), wh_b=nrm((A,)),
        wc_w=nrm((A, 1)),
        v_w=nrm((1, A)),
        fc1_w=nrm((2 * H, 3 * H)), fc1_b=nrm((2 * H,)),
        fc2_w=nrm((V, 2 * H)), fc2_b=nrm((V,)),
        pgen_w=nrm((1, E + 4 * H)),
    )


def build_kernel_params(p, H, E, max_oov):
    """ONE-TIME prep: slice / transpose / fuse / pad torch-style params into
    kernel operands.  Hoisted out of the per-step path."""
    V = p['fc2_w'].shape[0]
    Vext = V + max_oov
    Vp = ((Vext + 127) // 128) * 128          # lane-dense extended vocab

    kp = {}
    xci_t = p['xci_w'].T                       # [E + 2H, E]; input order = (y, context)
    kp['w_xci_y'], kp['w_xci_c'] = xci_t[:E], xci_t[E:]
    kp['b_xci'] = p['xci_b'][None, :]

    # fused LSTM weights: [E,4H], [H,4H], bias [1,4H] (PyTorch gate order i,f,g,o)
    kp['w_ih'] = p['w_ih'].T
    kp['w_hh'] = p['w_hh'].T
    kp['b_lstm'] = (p['b_ih'] + p['b_hh'])[None, :]

    kp['w_wh'], kp['b_wh'] = p['wh_w'].T, p['wh_b'][None, :]   # used only at encode time
    ws_t = p['ws_w'].T                         # [2H, A]; input order = (h, c)
    kp['w_ws_h'], kp['w_ws_c'] = ws_t[:H], ws_t[H:]
    kp['b_ws'] = p['ws_b'][None, :]
    kp['w_wc'] = p['wc_w'].T                   # [1, A]
    kp['w_v'] = p['v_w']                       # [1, A]

    fc1_t = p['fc1_w'].T                       # [3H, 2H]; input order = (context, h)
    kp['w_fc1_ctx'], kp['w_fc1_h'] = fc1_t[:2 * H], fc1_t[2 * H:]
    kp['b_fc1'] = p['fc1_b'][None, :]
    fc2_t = p['fc2_w'].T                       # [2H, V] -> pad to lane-dense Vp
    kp['w_fc2'] = jnp.pad(fc2_t, ((0, 0), (0, Vp - V)))
    kp['b_fc2'] = jnp.pad(p['fc2_b'][None, :], ((0, 0), (0, Vp - V)),
                          constant_values=-1e9)

    pg = p['pgen_w']                           # [1, 2H + 2H + E]; (context, h, c, x)
    kp['wp_ctx'] = pg[:, :2 * H]
    kp['wp_h'] = pg[:, 2 * H:3 * H]
    kp['wp_c'] = pg[:, 3 * H:4 * H]
    kp['wp_x'] = pg[:, 4 * H:]

    kp = {k: jnp.asarray(v, jnp.float32) for k, v in kp.items()}
    return kp, Vext, Vp


def precompute_encoder_features(kp, encoder_outputs):
    """W_h(encoder_outputs): state-independent, computed once per sequence."""
    return encoder_outputs.astype(jnp.float32) @ kp['w_wh'] + kp['b_wh']


# -----------------------------------------------------------------------------
# Wrapper for ONE decode step: only cheap casts + the fused Pallas call.
# -----------------------------------------------------------------------------
def decoder_step_pallas(kp, x, y, encoder_outputs, enc_feat, ids, coverages,
                        context_t, h0, c0, Vp):
    B, L, twoH = encoder_outputs.shape
    H = twoH // 2

    operands = [
        y[:, 0, :].astype(jnp.float32),
        x[:, 0, :].astype(jnp.float32),
        encoder_outputs.astype(jnp.float32),
        enc_feat.astype(jnp.float32),
        ids.astype(jnp.int32),
        coverages.astype(jnp.float32),
        context_t.astype(jnp.float32),
        h0.astype(jnp.float32),
        c0.astype(jnp.float32),
        kp['w_xci_y'], kp['w_xci_c'], kp['b_xci'],
        kp['w_ih'], kp['w_hh'], kp['b_lstm'],
        kp['w_ws_h'], kp['w_ws_c'], kp['b_ws'], kp['w_wc'], kp['w_v'],
        kp['w_fc1_ctx'], kp['w_fc1_h'], kp['b_fc1'], kp['w_fc2'], kp['b_fc2'],
        kp['wp_ctx'], kp['wp_h'], kp['wp_c'], kp['wp_x'],
    ]
    out_shapes = (
        jax.ShapeDtypeStruct((B, Vp), jnp.float32),    # lane-padded p
        jax.ShapeDtypeStruct((B, H), jnp.float32),     # h_t  (next last_hidden_state)
        jax.ShapeDtypeStruct((B, H), jnp.float32),     # c_t  (next last_cell_state)
        jax.ShapeDtypeStruct((B, twoH), jnp.float32),  # context_t (next step)
        jax.ShapeDtypeStruct((B, L), jnp.float32),     # updated coverages
    )
    vmem = pltpu.MemorySpace.VMEM
    # TODO(synk): in a jitted decode loop, pass
    #   input_output_aliases={5: 4, 6: 3, 7: 1, 8: 2}
    # to update the coverage / context / hidden / cell state buffers in place.
    return pl.pallas_call(
        _decoder_kernel,
        out_shape=out_shapes,
        in_specs=[pl.BlockSpec(memory_space=vmem) for _ in operands],
        out_specs=tuple(pl.BlockSpec(memory_space=vmem) for _ in out_shapes),
    )(*operands)


# -----------------------------------------------------------------------------
# Pure-JAX reference (mirrors the PyTorch forward literally) for validation.
# -----------------------------------------------------------------------------
def decoder_forward_ref(p, x, y, enc, ids, cov, ctx, h0, c0, max_oov):
    B = y.shape[0]
    H = h0.shape[-1]
    inp = jnp.concatenate([y[:, 0, :], ctx], axis=-1)
    xl = inp @ p['xci_w'].T + p['xci_b']
    gates = xl @ p['w_ih'].T + p['b_ih'] + h0 @ p['w_hh'].T + p['b_hh']
    i = jax.nn.sigmoid(gates[:, 0 * H:1 * H])
    f = jax.nn.sigmoid(gates[:, 1 * H:2 * H])
    g = jnp.tanh(gates[:, 2 * H:3 * H])
    o = jax.nn.sigmoid(gates[:, 3 * H:4 * H])
    c = f * c0 + i * g
    h = o * jnp.tanh(c)
    sc = jnp.concatenate([h, c], axis=-1)

    enc_feat = enc @ p['wh_w'].T + p['wh_b']
    dec_feat = sc @ p['ws_w'].T + p['ws_b']
    cov_feat = jnp.einsum('bl,a->bla', cov, p['wc_w'][:, 0])
    e_t = jnp.tanh(enc_feat + dec_feat[:, None, :] + cov_feat)
    scores = (e_t @ p['v_w'].T)[..., 0]
    attn = jax.nn.softmax(scores, axis=-1)
    context = jnp.einsum('bl,bln->bn', attn, enc)

    fc1 = jnp.concatenate([context, h], axis=-1) @ p['fc1_w'].T + p['fc1_b']
    fc2 = fc1 @ p['fc2_w'].T + p['fc2_b']
    p_vocab = jax.nn.softmax(fc2, axis=-1)

    gen_in = jnp.concatenate([context, sc, x[:, 0, :]], axis=-1)
    p_gen = jax.nn.sigmoid(gen_in @ p['pgen_w'].T)

    attn_w = (1.0 - p_gen) * attn
    p_vocab_w = p_gen * p_vocab
    pext = jnp.concatenate(
        [p_vocab_w, jnp.zeros((B, max_oov), jnp.float32)], axis=-1)
    p_full = pext.at[jnp.arange(B)[:, None], ids].add(attn_w)
    return p_full, h, c, context, cov + attn


if __name__ == "__main__":
    # Small shapes consistent with the module.
    B = 2            # batch_size
    H = 32           # hidden_size
    E = 32           # embw_size == input_size (required by x_c_i -> LSTM)
    A = 2 * H        # attention_size == 2*hidden_size (required by .view(-1, n))
    L = 8            # encoder sequence length
    V = 48           # vocab_size
    MAX_OOV = 8      # max_oov_nums

    key = jax.random.PRNGKey(0)
    kparam_key, kd = jax.random.split(key)
    params = init_torch_style_params(kparam_key, V, H, E, A)

    d0, d1, d2, d3, d4 = jax.random.split(kd, 5)
    x = jax.random.normal(d0, (B, 1, E), jnp.float32)          # decoder input embedding
    y = jax.random.normal(d1, (B, 1, E), jnp.float32)          # teacher-forcing embedding
    encoder_outputs = jax.random.normal(d2, (B, L, 2 * H), jnp.float32)
    ids = jax.random.randint(d3, (B, L), 0, V + MAX_OOV, dtype=jnp.int32)
    context_t = jax.random.normal(d4, (B, 2 * H), jnp.float32)  # self.context_t
    coverages = jnp.zeros((B, L), jnp.float32)                  # first-call coverages
    h0 = jnp.zeros((B, H), jnp.float32)                         # last_hidden_state
    c0 = jnp.zeros((B, H), jnp.float32)                         # last_cell_state

    # ---- one-time prep, hoisted out of the per-step path ----
    kp, Vext, Vp = build_kernel_params(params, H, E, MAX_OOV)
    enc_feat = precompute_encoder_features(kp, encoder_outputs)   # once per sequence

    # ---- pure-JAX reference (mirrors the PyTorch forward) ----
    p_ref, h_ref_, c_ref_, ctx_ref_, cov_ref_ = decoder_forward_ref(
        params, x, y, encoder_outputs, ids, coverages, context_t, h0, c0, MAX_OOV)
    p_ref = jax.block_until_ready(p_ref)

    # ---- fused Pallas decode step ----
    p_pad, h_t, c_t, ctx_new, cov_new = decoder_step_pallas(
        kp, x, y, encoder_outputs, enc_feat, ids, coverages, context_t, h0, c0, Vp)
    jax.block_until_ready((p_pad, h_t, c_t, ctx_new, cov_new))
    p_kernel = p_pad[:, :Vext]

    assert p_kernel.shape == (B, Vext)

    def maxerr(a, b):
        return float(jnp.max(jnp.abs(a - b)))

    err_p = maxerr(p_kernel, p_ref)
    err_h = maxerr(h_t, h_ref_)
    err_c = maxerr(c_t, c_ref_)
    err_ctx = maxerr(ctx_new, ctx_ref_)
    err_cov = maxerr(cov_new, cov_ref_)
    assert err_p < 5e-3, f"p mismatch: {err_p}"
    assert err_h < 5e-3, f"h mismatch: {err_h}"
    assert err_c < 5e-3, f"c mismatch: {err_c}"
    assert err_ctx < 5e-3, f"context mismatch: {err_ctx}"
    assert err_cov < 5e-3, f"coverage mismatch: {err_cov}"
    print("KERNEL_OK")
</pallas_src>

<mosaic_0001>
module attributes {stable_mosaic.version = 11 : i64} {
  func.func @_decoder_kernel(%arg0: memref<2x32xf32, #tpu.memory_space<vmem>>, %arg1: memref<2x32xf32, #tpu.memory_space<vmem>>, %arg2: memref<2x8x64xf32, #tpu.memory_space<vmem>>, %arg3: memref<2x8x64xf32, #tpu.memory_space<vmem>>, %arg4: memref<2x8xi32, #tpu.memory_space<vmem>>, %arg5: memref<2x8xf32, #tpu.memory_space<vmem>>, %arg6: memref<2x64xf32, #tpu.memory_space<vmem>>, %arg7: memref<2x32xf32, #tpu.memory_space<vmem>>, %arg8: memref<2x32xf32, #tpu.memory_space<vmem>>, %arg9: memref<32x32xf32, #tpu.memory_space<vmem>>, %arg10: memref<64x32xf32, #tpu.memory_space<vmem>>, %arg11: memref<1x32xf32, #tpu.memory_space<vmem>>, %arg12: memref<32x128xf32, #tpu.memory_space<vmem>>, %arg13: memref<32x128xf32, #tpu.memory_space<vmem>>, %arg14: memref<1x128xf32, #tpu.memory_space<vmem>>, %arg15: memref<32x64xf32, #tpu.memory_space<vmem>>, %arg16: memref<32x64xf32, #tpu.memory_space<vmem>>, %arg17: memref<1x64xf32, #tpu.memory_space<vmem>>, %arg18: memref<1x64xf32, #tpu.memory_space<vmem>>, %arg19: memref<1x64xf32, #tpu.memory_space<vmem>>, %arg20: memref<64x64xf32, #tpu.memory_space<vmem>>, %arg21: memref<32x64xf32, #tpu.memory_space<vmem>>, %arg22: memref<1x64xf32, #tpu.memory_space<vmem>>, %arg23: memref<64x128xf32, #tpu.memory_space<vmem>>, %arg24: memref<1x128xf32, #tpu.memory_space<vmem>>, %arg25: memref<1x64xf32, #tpu.memory_space<vmem>>, %arg26: memref<1x32xf32, #tpu.memory_space<vmem>>, %arg27: memref<1x32xf32, #tpu.memory_space<vmem>>, %arg28: memref<1x32xf32, #tpu.memory_space<vmem>>, %arg29: memref<2x128xf32, #tpu.memory_space<vmem>>, %arg30: memref<2x32xf32, #tpu.memory_space<vmem>>, %arg31: memref<2x32xf32, #tpu.memory_space<vmem>>, %arg32: memref<2x64xf32, #tpu.memory_space<vmem>>, %arg33: memref<2x8xf32, #tpu.memory_space<vmem>>) attributes {dimension_semantics = [], scalar_prefetch = 0 : i64, scratch_operands = 0 : i64, tpu.core_type = #tpu.core_type<tc>} {
    %c0 = arith.constant 0 : index
    %c0_0 = arith.constant 0 : index
    %0 = vector.load %arg0[%c0, %c0_0] : memref<2x32xf32, #tpu.memory_space<vmem>>, vector<2x32xf32>
    %c0_1 = arith.constant 0 : index
    %c0_2 = arith.constant 0 : index
    %1 = vector.load %arg1[%c0_1, %c0_2] : memref<2x32xf32, #tpu.memory_space<vmem>>, vector<2x32xf32>
    %c0_3 = arith.constant 0 : index
    %c0_4 = arith.constant 0 : index
    %2 = vector.load %arg6[%c0_3, %c0_4] : memref<2x64xf32, #tpu.memory_space<vmem>>, vector<2x64xf32>
    %c0_5 = arith.constant 0 : index
    %c0_6 = arith.constant 0 : index
    %3 = vector.load %arg7[%c0_5, %c0_6] : memref<2x32xf32, #tpu.memory_space<vmem>>, vector<2x32xf32>
    %c0_7 = arith.constant 0 : index
    %c0_8 = arith.constant 0 : index
    %4 = vector.load %arg8[%c0_7, %c0_8] : memref<2x32xf32, #tpu.memory_space<vmem>>, vector<2x32xf32>
    %c0_9 = arith.constant 0 : index
    %c0_10 = arith.constant 0 : index
    %5 = vector.load %arg5[%c0_9, %c0_10] : memref<2x8xf32, #tpu.memory_space<vmem>>, vector<2x8xf32>
    %c0_11 = arith.constant 0 : index
    %c0_12 = arith.constant 0 : index
    %6 = vector.load %arg9[%c0_11, %c0_12] : memref<32x32xf32, #tpu.memory_space<vmem>>, vector<32x32xf32>
    %cst = arith.constant dense<0.000000e+00> : vector<2x32xf32>
    %7 = tpu.matmul %0, %6, %cst {dimension_numbers = #tpu.dot_dimension_numbers<[1], [0], [0], [1], [0, 0, 1, 1], [], []>} : vector<2x32xf32>, vector<32x32xf32>, vector<2x32xf32> -> vector<2x32xf32>
    %c0_13 = arith.constant 0 : index
    %c0_14 = arith.constant 0 : index
    %8 = vector.load %arg10[%c0_13, %c0_14] : memref<64x32xf32, #tpu.memory_space<vmem>>, vector<64x32xf32>
    %cst_15 = arith.constant dense<0.000000e+00> : vector<2x32xf32>
    %9 = tpu.matmul %2, %8, %cst_15 {dimension_numbers = #tpu.dot_dimension_numbers<[1], [0], [0], [1], [0, 0, 1, 1], [], []>} : vector<2x64xf32>, vector<64x32xf32>, vector<2x32xf32> -> vector<2x32xf32>
    %10 = arith.addf %7, %9 : vector<2x32xf32>
    %c0_16 = arith.constant 0 : index
    %c0_17 = arith.constant 0 : index
    %11 = vector.load %arg11[%c0_16, %c0_17] : memref<1x32xf32, #tpu.memory_space<vmem>>, vector<1x32xf32>
    %12 = vector.broadcast %11 : vector<1x32xf32> to vector<2x32xf32>
    %13 = arith.addf %10, %12 : vector<2x32xf32>
    %c0_18 = arith.constant 0 : index
    %c0_19 = arith.constant 0 : index
    %14 = vector.load %arg12[%c0_18, %c0_19] : memref<32x128xf32, #tpu.memory_space<vmem>>, vector<32x128xf32>
    %cst_20 = arith.constant dense<0.000000e+00> : vector<2x128xf32>
    %15 = tpu.matmul %13, %14, %cst_20 {dimension_numbers = #tpu.dot_dimension_numbers<[1], [0], [0], [1], [0, 0, 1, 1], [], []>} : vector<2x32xf32>, vector<32x128xf32>, vector<2x128xf32> -> vector<2x128xf32>
    %c0_21 = arith.constant 0 : index
    %c0_22 = arith.constant 0 : index
    %16 = vector.load %arg13[%c0_21, %c0_22] : memref<32x128xf32, #tpu.memory_space<vmem>>, vector<32x128xf32>
    %cst_23 = arith.constant dense<0.000000e+00> : vector<2x128xf32>
    %17 = tpu.matmul %3, %16, %cst_23 {dimension_numbers = #tpu.dot_dimension_numbers<[1], [0], [0], [1], [0, 0, 1, 1], [], []>} : vector<2x32xf32>, vector<32x128xf32>, vector<2x128xf32> -> vector<2x128xf32>
    %18 = arith.addf %15, %17 : vector<2x128xf32>
    %c0_24 = arith.constant 0 : index
    %c0_25 = arith.constant 0 : index
    %19 = vector.load %arg14[%c0_24, %c0_25] : memref<1x128xf32, #tpu.memory_space<vmem>>, vector<1x128xf32>
    %20 = vector.broadcast %19 : vector<1x128xf32> to vector<2x128xf32>
    %21 = arith.addf %18, %20 : vector<2x128xf32>
    %22 = vector.extract_strided_slice %21 {offsets = [0, 0], sizes = [2, 32], strides = [1, 1]} : vector<2x128xf32> to vector<2x32xf32>
    %23 = arith.negf %22 : vector<2x32xf32>
    %24 = math.exp %23 : vector<2x32xf32>
    %cst_26 = arith.constant 1.000000e+00 : f32
    %25 = vector.broadcast %cst_26 : f32 to vector<2x32xf32>
    %26 = arith.addf %25, %24 : vector<2x32xf32>
    %27 = arith.divf %25, %26 : vector<2x32xf32>
    %28 = vector.extract_strided_slice %21 {offsets = [0, 32], sizes = [2, 32], strides = [1, 1]} : vector<2x128xf32> to vector<2x32xf32>
    %29 = arith.negf %28 : vector<2x32xf32>
    %30 = math.exp %29 : vector<2x32xf32>
    %cst_27 = arith.constant 1.000000e+00 : f32
    %31 = vector.broadcast %cst_27 : f32 to vector<2x32xf32>
    %32 = arith.addf %31, %30 : vector<2x32xf32>
    %33 = arith.divf %31, %32 : vector<2x32xf32>
    %34 = vector.extract_strided_slice %21 {offsets = [0, 64], sizes = [2, 32], strides = [1, 1]} : vector<2x128xf32> to vector<2x32xf32>
    %35 = math.tanh %34 : vector<2x32xf32>
    %36 = vector.extract_strided_slice %21 {offsets = [0, 96], sizes = [2, 32], strides = [1, 1]} : vector<2x128xf32> to vector<2x32xf32>
    %37 = arith.negf %36 : vector<2x32xf32>
    %38 = math.exp %37 : vector<2x32xf32>
    %cst_28 = arith.constant 1.000000e+00 : f32
    %39 = vector.broadcast %cst_28 : f32 to vector<2x32xf32>
    %40 = arith.addf %39, %38 : vector<2x32xf32>
    %41 = arith.divf %39, %40 : vector<2x32xf32>
    %42 = arith.mulf %33, %4 : vector<2x32xf32>
    %43 = arith.mulf %27, %35 : vector<2x32xf32>
    %44 = arith.addf %42, %43 : vector<2x32xf32>
    %45 = math.tanh %44 : vector<2x32xf32>
    %46 = arith.mulf %41, %45 : vector<2x32xf32>
    %c0_29 = arith.constant 0 : index
    %c0_30 = arith.constant 0 : index
    %c0_31 = arith.constant 0 : index
    %47 = vector.load %arg2[%c0_29, %c0_30, %c0_31] : memref<2x8x64xf32, #tpu.memory_space<vmem>>, vector<2x8x64xf32>
    %c0_32 = arith.constant 0 : index
    %c0_33 = arith.constant 0 : index
    %48 = vector.load %arg15[%c0_32, %c0_33] : memref<32x64xf32, #tpu.memory_space<vmem>>, vector<32x64xf32>
    %cst_34 = arith.constant dense<0.000000e+00> : vector<2x64xf32>
    %49 = tpu.matmul %46, %48, %cst_34 {dimension_numbers = #tpu.dot_dimension_numbers<[1], [0], [0], [1], [0, 0, 1, 1], [], []>} : vector<2x32xf32>, vector<32x64xf32>, vector<2x64xf32> -> vector<2x64xf32>
    %c0_35 = arith.constant 0 : index
    %c0_36 = arith.constant 0 : index
    %50 = vector.load %arg16[%c0_35, %c0_36] : memref<32x64xf32, #tpu.memory_space<vmem>>, vector<32x64xf32>
    %cst_37 = arith.constant dense<0.000000e+00> : vector<2x64xf32>
    %51 = tpu.matmul %44, %50, %cst_37 {dimension_numbers = #tpu.dot_dimension_numbers<[1], [0], [0], [1], [0, 0, 1, 1], [], []>} : vector<2x32xf32>, vector<32x64xf32>, vector<2x64xf32> -> vector<2x64xf32>
    %52 = arith.addf %49, %51 : vector<2x64xf32>
    %c0_38 = arith.constant 0 : index
    %c0_39 = arith.constant 0 : index
    %53 = vector.load %arg17[%c0_38, %c0_39] : memref<1x64xf32, #tpu.memory_space<vmem>>, vector<1x64xf32>
    %54 = vector.broadcast %53 : vector<1x64xf32> to vector<2x64xf32>
    %55 = arith.addf %52, %54 : vector<2x64xf32>
    %c0_40 = arith.constant 0 : index
    %c0_41 = arith.constant 0 : index
    %c0_42 = arith.constant 0 : index
    %56 = vector.load %arg3[%c0_40, %c0_41, %c0_42] : memref<2x8x64xf32, #tpu.memory_space<vmem>>, vector<2x8x64xf32>
    %57 = vector.shape_cast %55 : vector<2x64xf32> to vector<2x1x64xf32>
    %58 = vector.broadcast %57 : vector<2x1x64xf32> to vector<2x8x64xf32>
    %59 = arith.addf %56, %58 : vector<2x8x64xf32>
    %60 = vector.shape_cast %5 : vector<2x8xf32> to vector<2x8x1xf32>
    %c0_43 = arith.constant 0 : index
    %c0_44 = arith.constant 0 : index
    %61 = vector.load %arg18[%c0_43, %c0_44] : memref<1x64xf32, #tpu.memory_space<vmem>>, vector<1x64xf32>
    %62 = vector.shape_cast %61 : vector<1x64xf32> to vector<1x1x64xf32>
    %63 = vector.broadcast %60 : vector<2x8x1xf32> to vector<2x8x64xf32>
    %64 = vector.broadcast %62 : vector<1x1x64xf32> to vector<2x8x64xf32>
    %65 = arith.mulf %63, %64 : vector<2x8x64xf32>
    %66 = arith.addf %59, %65 : vector<2x8x64xf32>
    %67 = math.tanh %66 : vector<2x8x64xf32>
    %c0_45 = arith.constant 0 : index
    %c0_46 = arith.constant 0 : index
    %68 = vector.load %arg19[%c0_45, %c0_46] : memref<1x64xf32, #tpu.memory_space<vmem>>, vector<1x64xf32>
    %69 = vector.shape_cast %68 : vector<1x64xf32> to vector<1x1x64xf32>
    %70 = vector.broadcast %69 : vector<1x1x64xf32> to vector<2x8x64xf32>
    %71 = arith.mulf %67, %70 : vector<2x8x64xf32>
    %cst_47 = arith.constant dense<0.000000e+00> : vector<2x8xf32>
    %72 = vector.multi_reduction <add>, %71, %cst_47 [2] : vector<2x8x64xf32> to vector<2x8xf32>
    %cst_48 = arith.constant dense<0xFF800000> : vector<2xf32>
    %73 = vector.multi_reduction <maximumf>, %72, %cst_48 [1] : vector<2x8xf32> to vector<2xf32>
    %74 = vector.shape_cast %73 : vector<2xf32> to vector<2x1xf32>
    %75 = vector.broadcast %74 : vector<2x1xf32> to vector<2x8xf32>
    %76 = arith.subf %72, %75 : vector<2x8xf32>
    %77 = math.exp %76 : vector<2x8xf32>
    %cst_49 = arith.constant dense<0.000000e+00> : vector<2xf32>
    %78 = vector.multi_reduction <add>, %77, %cst_49 [1] : vector<2x8xf32> to vector<2xf32>
    %79 = vector.shape_cast %78 : vector<2xf32> to vector<2x1xf32>
    %80 = tpu.reciprocal %79 {approx = true} : vector<2x1xf32> -> vector<2x1xf32>
    %81 = vector.broadcast %80 : vector<2x1xf32> to vector<2x8xf32>
    %82 = arith.mulf %77, %81 : vector<2x8xf32>
    %83 = vector.shape_cast %82 : vector<2x8xf32> to vector<2x8x1xf32>
    %84 = vector.broadcast %83 : vector<2x8x1xf32> to vector<2x8x64xf32>
    %85 = arith.mulf %84, %47 : vector<2x8x64xf32>
    %cst_50 = arith.constant dense<0.000000e+00> : vector<2x64xf32>
    %86 = vector.multi_reduction <add>, %85, %cst_50 [1] : vector<2x8x64xf32> to vector<2x64xf32>
    %c0_51 = arith.constant 0 : index
    %c0_52 = arith.constant 0 : index
    %87 = vector.load %arg20[%c0_51, %c0_52] : memref<64x64xf32, #tpu.memory_space<vmem>>, vector<64x64xf32>
    %cst_53 = arith.constant dense<0.000000e+00> : vector<2x64xf32>
    %88 = tpu.matmul %86, %87, %cst_53 {dimension_numbers = #tpu.dot_dimension_numbers<[1], [0], [0], [1], [0, 0, 1, 1], [], []>} : vector<2x64xf32>, vector<64x64xf32>, vector<2x64xf32> -> vector<2x64xf32>
    %c0_54 = arith.constant 0 : index
    %c0_55 = arith.constant 0 : index
    %89 = vector.load %arg21[%c0_54, %c0_55] : memref<32x64xf32, #tpu.memory_space<vmem>>, vector<32x64xf32>
    %cst_56 = arith.constant dense<0.000000e+00> : vector<2x64xf32>
    %90 = tpu.matmul %46, %89, %cst_56 {dimension_numbers = #tpu.dot_dimension_numbers<[1], [0], [0], [1], [0, 0, 1, 1], [], []>} : vector<2x32xf32>, vector<32x64xf32>, vector<2x64xf32> -> vector<2x64xf32>
    %91 = arith.addf %88, %90 : vector<2x64xf32>
    %c0_57 = arith.constant 0 : index
    %c0_58 = arith.constant 0 : index
    %92 = vector.load %arg22[%c0_57, %c0_58] : memref<1x64xf32, #tpu.memory_space<vmem>>, vector<1x64xf32>
    %93 = vector.broadcast %92 : vector<1x64xf32> to vector<2x64xf32>
    %94 = arith.addf %91, %93 : vector<2x64xf32>
    %c0_59 = arith.constant 0 : index
    %c0_60 = arith.constant 0 : index
    %95 = vector.load %arg23[%c0_59, %c0_60] : memref<64x128xf32, #tpu.memory_space<vmem>>, vector<64x128xf32>
    %cst_61 = arith.constant dense<0.000000e+00> : vector<2x128xf32>
    %96 = tpu.matmul %94, %95, %cst_61 {dimension_numbers = #tpu.dot_dimension_numbers<[1], [0], [0], [1], [0, 0, 1, 1], [], []>} : vector<2x64xf32>, vector<64x128xf32>, vector<2x128xf32> -> vector<2x128xf32>
    %c0_62 = arith.constant 0 : index
    %c0_63 = arith.constant 0 : index
    %97 = vector.load %arg24[%c0_62, %c0_63] : memref<1x128xf32, #tpu.memory_space<vmem>>, vector<1x128xf32>
    %98 = vector.broadcast %97 : vector<1x128xf32> to vector<2x128xf32>
    %99 = arith.addf %96, %98 : vector<2x128xf32>
    %cst_64 = arith.constant dense<0xFF800000> : vector<2xf32>
    %100 = vector.multi_reduction <maximumf>, %99, %cst_64 [1] : vector<2x128xf32> to vector<2xf32>
    %101 = vector.shape_cast %100 : vector<2xf32> to vector<2x1xf32>
    %102 = vector.broadcast %101 : vector<2x1xf32> to vector<2x128xf32>
    %103 = arith.subf %99, %102 : vector<2x128xf32>
    %104 = math.exp %103 : vector<2x128xf32>
    %cst_65 = arith.constant dense<0.000000e+00> : vector<2xf32>
    %105 = vector.multi_reduction <add>, %104, %cst_65 [1] : vector<2x128xf32> to vector<2xf32>
    %106 = vector.shape_cast %105 : vector<2xf32> to vector<2x1xf32>
    %107 = tpu.reciprocal %106 {approx = true} : vector<2x1xf32> -> vector<2x1xf32>
    %108 = vector.broadcast %107 : vector<2x1xf32> to vector<2x128xf32>
    %109 = arith.mulf %104, %108 : vector<2x128xf32>
    %c0_66 = arith.constant 0 : index
    %c0_67 = arith.constant 0 : index
    %110 = vector.load %arg25[%c0_66, %c0_67] : memref<1x64xf32, #tpu.memory_space<vmem>>, vector<1x64xf32>
    %111 = vector.broadcast %110 : vector<1x64xf32> to vector<2x64xf32>
    %112 = arith.mulf %86, %111 : vector<2x64xf32>
    %cst_68 = arith.constant dense<0.000000e+00> : vector<2xf32>
    %113 = vector.multi_reduction <add>, %112, %cst_68 [1] : vector<2x64xf32> to vector<2xf32>
    %114 = vector.shape_cast %113 : vector<2xf32> to vector<2x1xf32>
    %c0_69 = arith.constant 0 : index
    %c0_70 = arith.constant 0 : index
    %115 = vector.load %arg26[%c0_69, %c0_70] : memref<1x32xf32, #tpu.memory_space<vmem>>, vector<1x32xf32>
    %116 = vector.broadcast %115 : vector<1x32xf32> to vector<2x32xf32>
    %117 = arith.mulf %46, %116 : vector<2x32xf32>
    %c0_71 = arith.constant 0 : index
    %c0_72 = arith.constant 0 : index
    %118 = vector.load %arg27[%c0_71, %c0_72] : memref<1x32xf32, #tpu.memory_space<vmem>>, vector<1x32xf32>
    %119 = vector.broadcast %118 : vector<1x32xf32> to vector<2x32xf32>
    %120 = arith.mulf %44, %119 : vector<2x32xf32>
    %121 = arith.addf %117, %120 : vector<2x32xf32>
    %cst_73 = arith.constant dense<0.000000e+00> : vector<2xf32>
    %122 = vector.multi_reduction <add>, %121, %cst_73 [1] : vector<2x32xf32> to vector<2xf32>
    %123 = vector.shape_cast %122 : vector<2xf32> to vector<2x1xf32>
    %124 = arith.addf %114, %123 : vector<2x1xf32>
    %c0_74 = arith.constant 0 : index
    %c0_75 = arith.constant 0 : index
    %125 = vector.load %arg28[%c0_74, %c0_75] : memref<1x32xf32, #tpu.memory_space<vmem>>, vector<1x32xf32>
    %126 = vector.broadcast %125 : vector<1x32xf32> to vector<2x32xf32>
    %127 = arith.mulf %1, %126 : vector<2x32xf32>
    %cst_76 = arith.constant dense<0.000000e+00> : vector<2xf32>
    %128 = vector.multi_reduction <add>, %127, %cst_76 [1] : vector<2x32xf32> to vector<2xf32>
    %129 = vector.shape_cast %128 : vector<2xf32> to vector<2x1xf32>
    %130 = arith.addf %124, %129 : vector<2x1xf32>
    %131 = arith.negf %130 : vector<2x1xf32>
    %132 = math.exp %131 : vector<2x1xf32>
    %cst_77 = arith.constant 1.000000e+00 : f32
    %133 = vector.broadcast %cst_77 : f32 to vector<2x1xf32>
    %134 = arith.addf %133, %132 : vector<2x1xf32>
    %135 = arith.divf %133, %134 : vector<2x1xf32>
    %cst_78 = arith.constant 1.000000e+00 : f32
    %136 = vector.broadcast %cst_78 : f32 to vector<2x1xf32>
    %137 = arith.subf %136, %135 : vector<2x1xf32>
    %138 = vector.broadcast %137 : vector<2x1xf32> to vector<2x8xf32>
    %139 = arith.mulf %138, %82 : vector<2x8xf32>
    %140 = vector.broadcast %135 : vector<2x1xf32> to vector<2x128xf32>
    %141 = arith.mulf %140, %109 : vector<2x128xf32>
    %c0_79 = arith.constant 0 : index
    %c0_80 = arith.constant 0 : index
    %142 = vector.load %arg4[%c0_79, %c0_80] : memref<2x8xi32, #tpu.memory_space<vmem>>, vector<2x8xi32>
    %143 = tpu.iota {dimensions = array<i32: 2>} : vector<2x8x128xi32>
    %144 = vector.shape_cast %142 : vector<2x8xi32> to vector<2x8x1xi32>
    %145 = vector.broadcast %144 : vector<2x8x1xi32> to vector<2x8x128xi32>
    %146 = arith.cmpi eq, %143, %145 : vector<2x8x128xi32>
    %147 = vector.shape_cast %139 : vector<2x8xf32> to vector<2x8x1xf32>
    %cst_81 = arith.constant 0.000000e+00 : f32
    %148 = vector.shape_cast %147 : vector<2x8x1xf32> to vector<2x8x1xf32>
    %149 = vector.broadcast %148 : vector<2x8x1xf32> to vector<2x8x128xf32>
    %150 = vector.broadcast %cst_81 : f32 to vector<2x8x128xf32>
    %151 = arith.select %146, %149, %150 : vector<2x8x128xi1>, vector<2x8x128xf32>
    %cst_82 = arith.constant dense<0.000000e+00> : vector<2x128xf32>
    %152 = vector.multi_reduction <add>, %151, %cst_82 [1] : vector<2x8x128xf32> to vector<2x128xf32>
    %153 = arith.addf %141, %152 : vector<2x128xf32>
    %c0_83 = arith.constant 0 : index
    %c0_84 = arith.constant 0 : index
    %154 = vector.load %arg29[%c0_83, %c0_84] : memref<2x128xf32, #tpu.memory_space<vmem>>, vector<2x128xf32>
    tpu.vector_store %arg29[%c0_83, %c0_84], %153 {strides = array<i32>} : memref<2x128xf32, #tpu.memory_space<vmem>>, vector<2x128xf32>,
    %c0_85 = arith.constant 0 : index
    %c0_86 = arith.constant 0 : index
    %155 = vector.load %arg30[%c0_85, %c0_86] : memref<2x32xf32, #tpu.memory_space<vmem>>, vector<2x32xf32>
    tpu.vector_store %arg30[%c0_85, %c0_86], %46 {strides = array<i32>} : memref<2x32xf32, #tpu.memory_space<vmem>>, vector<2x32xf32>,
    %c0_87 = arith.constant 0 : index
    %c0_88 = arith.constant 0 : index
    %156 = vector.load %arg31[%c0_87, %c0_88] : memref<2x32xf32, #tpu.memory_space<vmem>>, vector<2x32xf32>
    tpu.vector_store %arg31[%c0_87, %c0_88], %44 {strides = array<i32>} : memref<2x32xf32, #tpu.memory_space<vmem>>, vector<2x32xf32>,
    %c0_89 = arith.constant 0 : index
    %c0_90 = arith.constant 0 : index
    %157 = vector.load %arg32[%c0_89, %c0_90] : memref<2x64xf32, #tpu.memory_space<vmem>>, vector<2x64xf32>
    tpu.vector_store %arg32[%c0_89, %c0_90], %86 {strides = array<i32>} : memref<2x64xf32, #tpu.memory_space<vmem>>, vector<2x64xf32>,
    %158 = arith.addf %5, %82 : vector<2x8xf32>
    %c0_91 = arith.constant 0 : index
    %c0_92 = arith.constant 0 : index
    %159 = vector.load %arg33[%c0_91, %c0_92] : memref<2x8xf32, #tpu.memory_space<vmem>>, vector<2x8xf32>
    tpu.vector_store %arg33[%c0_91, %c0_92], %158 {strides = array<i32>} : memref<2x8xf32, #tpu.memory_space<vmem>>, vector<2x8xf32>,
    return
  }
}

</mosaic_0001>

<llo_original>
// kernel: tpu_custom_call.1
$region0: #{tpu_custom_call.1}
  #allocation0 [shape = 'u32[]', space=smem, size = 0x4, offset = 0x4, fixed_abs, tag = 'smem constant byte address 0x4 - core index']
  #allocation1 [shape = 'u32[72,128]{1,0:T(1,128)}', space=vmem, size = 0x9000, scoped, tag = 'internal scratch']
  %s0 = inlined_call_operand.smem [shape: u32[34], index: -1, kind: input, shape index: {}]
  %s1 = sld [smem:[%s0]]
  %s2 = scalar_lea.smem %s0, 1
  %s3 = sld [smem:[%s2]]
  %s4 = scalar_lea.smem %s0, 2
  %s5 = sld [smem:[%s4]]
  %s6 = scalar_lea.smem %s0, 3
  %s7 = sld [smem:[%s6]]
  %s8 = scalar_lea.smem %s0, 4
  %s9 = sld [smem:[%s8]]
  %s10 = scalar_lea.smem %s0, 5
  %s11 = sld [smem:[%s10]]
  %s12 = scalar_lea.smem %s0, 6
  %s13 = sld [smem:[%s12]]
  %s14 = scalar_lea.smem %s0, 7
  %s15 = sld [smem:[%s14]]
  %s16 = scalar_lea.smem %s0, 8
  %s17 = sld [smem:[%s16]]
  %s18 = scalar_lea.smem %s0, 9
  %s19 = sld [smem:[%s18]]
  %s20 = scalar_lea.smem %s0, 10
  %s21 = sld [smem:[%s20]]
  %s22 = scalar_lea.smem %s0, 11
  %s23 = sld [smem:[%s22]]
  %s24 = scalar_lea.smem %s0, 12
  %s25 = sld [smem:[%s24]]
  %s26 = scalar_lea.smem %s0, 13
  %s27 = sld [smem:[%s26]]
  %s28 = scalar_lea.smem %s0, 14
  %s29 = sld [smem:[%s28]]
  %s30 = scalar_lea.smem %s0, 15
  %s31 = sld [smem:[%s30]]
  %s32 = scalar_lea.smem %s0, 16
  %s33 = sld [smem:[%s32]]
  %s34 = scalar_lea.smem %s0, 17
  %s35 = sld [smem:[%s34]]
  %s36 = scalar_lea.smem %s0, 18
  %s37 = sld [smem:[%s36]]
  %s38 = scalar_lea.smem %s0, 19
  %s39 = sld [smem:[%s38]]
  %s40 = scalar_lea.smem %s0, 20
  %s41 = sld [smem:[%s40]]
  %s42 = scalar_lea.smem %s0, 21
  %s43 = sld [smem:[%s42]]
  %s44 = scalar_lea.smem %s0, 22
  %s45 = sld [smem:[%s44]]
  %s46 = scalar_lea.smem %s0, 23
  %s47 = sld [smem:[%s46]]
  %s48 = scalar_lea.smem %s0, 24
  %s49 = sld [smem:[%s48]]
  %s50 = scalar_lea.smem %s0, 25
  %s51 = sld [smem:[%s50]]
  %s52 = scalar_lea.smem %s0, 26
  %s53 = sld [smem:[%s52]]
  %s54 = scalar_lea.smem %s0, 27
  %s55 = sld [smem:[%s54]]
  %s56 = scalar_lea.smem %s0, 28
  %s57 = sld [smem:[%s56]]
  %s58 = scalar_lea.smem %s0, 29
  %s59 = sld [smem:[%s58]]
  %s60 = scalar_lea.smem %s0, 30
  %s61 = sld [smem:[%s60]]
  %s62 = scalar_lea.smem %s0, 31
  %s63 = sld [smem:[%s62]]
  %s64 = scalar_lea.smem %s0, 32
  %s65 = sld [smem:[%s64]]
  %s66 = scalar_lea.smem %s0, 33
  %s67 = sld [smem:[%s66]]
  %68 = xla_tuple %s59, %s61, %s63, %s65, %s67
  %s69 = sld [smem:[#allocation0]]
  $region226: #{tpu_custom_call.1} parent=0
    _
  %s71 = ssub.s32 1, %s69
  %s72 = scalar_select 0, %s71, %s69
  $region1: #{tpu_custom_call.1} parent=0
    #allocation2 [shape = 'u8[1024]{0}', space=vmem, size = 0x400, scoped, tag = 'input window, operand 1, single buffered']
    #allocation3 [shape = 's32[1]{0}', space=sflag, size = 0x4, scoped, tag = 'scoped memory for tpu_custom_call.1']
    #allocation4 [shape = 's32[1]{0}', space=sflag, size = 0x4, scoped, tag = 'scoped memory for tpu_custom_call.1']
    #allocation5 [shape = 'u8[8192]{0}', space=vmem, size = 0x2000, scoped, tag = 'input window, operand 3, single buffered']
    #allocation6 [shape = 's32[1]{0}', space=sflag, size = 0x4, scoped, tag = 'scoped memory for tpu_custom_call.1']
    #allocation7 [shape = 'u8[1024]{0}', space=vmem, size = 0x400, scoped, tag = 'input window, operand 4, single buffered']
    #allocation8 [shape = 'u8[1024]{0}', space=vmem, size = 0x400, scoped, tag = 'input window, operand 5, single buffered']
    #allocation9 [shape = 's32[1]{0}', space=sflag, size = 0x4, scoped, tag = 'scoped memory for tpu_custom_call.1']
    #allocation10 [shape = 'u8[1024]{0}', space=vmem, size = 0x400, scoped, tag = 'input window, operand 6, single buffered']
    #allocation11 [shape = 'u8[1024]{0}', space=vmem, size = 0x400, scoped, tag = 'input window, operand 7, single buffered']
    #allocation12 [shape = 's32[1]{0}', space=sflag, size = 0x4, scoped, tag = 'scoped memory for tpu_custom_call.1']
    #allocation13 [shape = 'u8[1024]{0}', space=vmem, size = 0x400, scoped, tag = 'input window, operand 8, single buffered']
    #allocation14 [shape = 'u8[16384]{0}', space=vmem, size = 0x4000, scoped, tag = 'input window, operand 12, single buffered']
    #allocation15 [shape = 's32[1]{0}', space=sflag, size = 0x4, scoped, tag = 'scoped memory for tpu_custom_call.1']
    #allocation16 [shape = 'u8[16384]{0}', space=vmem, size = 0x4000, scoped, tag = 'input window, operand 13, single buffered']
    #allocation17 [shape = 'u8[512]{0}', space=vmem, size = 0x400, scoped, tag = 'input window, operand 14, single buffered']
    #allocation18 [shape = 's32[1]{0}', space=sflag, size = 0x4, scoped, tag = 'scoped memory for tpu_custom_call.1']
    #allocation19 [shape = 'u8[16384]{0}', space=vmem, size = 0x4000, scoped, tag = 'input window, operand 15, single buffered']
    #allocation20 [shape = 'u8[16384]{0}', space=vmem, size = 0x4000, scoped, tag = 'input window, operand 16, single buffered']
    #allocation21 [shape = 's32[1]{0}', space=sflag, size = 0x4, scoped, tag = 'scoped memory for tpu_custom_call.1']
    #allocation22 [shape = 'u8[512]{0}', space=vmem, size = 0x400, scoped, tag = 'input window, operand 17, single buffered']
    #allocation23 [shape = 'u8[512]{0}', space=vmem, size = 0x400, scoped, tag = 'input window, operand 18, single buffered']
    #allocation24 [shape = 's32[1]{0}', space=sflag, size = 0x4, scoped, tag = 'scoped memory for tpu_custom_call.1']
    #allocation25 [shape = 'u8[512]{0}', space=vmem, size = 0x400, scoped, tag = 'input window, operand 19, single buffered']
    #allocation26 [shape = 'u8[16384]{0}', space=vmem, size = 0x4000, scoped, tag = 'input window, operand 21, single buffered']
    #allocation27 [shape = 's32[1]{0}', space=sflag, size = 0x4, scoped, tag = 'scoped memory for tpu_custom_call.1']
    #allocation28 [shape = 'u8[32768]{0}', space=vmem, size = 0x8000, scoped, tag = 'input window, operand 23, single buffered']
    #allocation29 [shape = 'u8[1024]{0}', space=vmem, size = 0x400, scoped, tag = 'output window, operand 0, single buffered']
    #allocation30 [shape = 'u8[1024]{0}', space=vmem, size = 0x400, scoped, tag = 'output window, operand 1, single buffered']
    #allocation31 [shape = 's32[1]{0}', space=sflag, size = 0x4, scoped, tag = 'scoped memory for tpu_custom_call.1']
    #allocation32 [shape = 'u8[1024]{0}', space=vmem, size = 0x400, scoped, tag = 'output window, operand 2, single buffered']
    #allocation33 [shape = 'u8[1024]{0}', space=vmem, size = 0x400, scoped, tag = 'output window, operand 3, single buffered']
    #allocation34 [shape = 's32[1]{0}', space=sflag, size = 0x4, scoped, tag = 'scoped memory for tpu_custom_call.1']
    #allocation35 [shape = 'u8[1024]{0}', space=vmem, size = 0x400, scoped, tag = 'output window, operand 4, single buffered']
    %73 = vsyncpa [#allocation3], 0
    %74 = vsyncpa [#allocation6], 0
    %75 = vsyncpa [#allocation9], 0
    %76 = vsyncpa [#allocation12], 0
    %77 = vsyncpa [#allocation15], 0
    %78 = vsyncpa [#allocation18], 0
    %79 = vsyncpa [#allocation21], 0
    %80 = vsyncpa [#allocation24], 0
    %81 = vsyncpa [#allocation27], 0
    %82 = vsyncpa [#allocation4], 0
    %83 = vsyncpa [#allocation31], 0
    %84 = vsyncpa [#allocation34], 0
    // Predicated region
    $region2: #{tpu_custom_call.1} parent=1 // pred_check
      _
    $region3: #{tpu_custom_call.1} parent=1 // pred_check_branch
      %86 = sbr.rel (0) target = $region5
    $region4: #{tpu_custom_call.1} parent=1 // pred_region
      _
    $region5: #{tpu_custom_call.1} parent=1 // pred_fallthru
      _
    // Predicated region
    $region6: #{tpu_custom_call.1} parent=1 // pred_check
      _
    $region7: #{tpu_custom_call.1} parent=1 // pred_check_branch
      %88 = sbr.rel (0) target = $region9
    $region8: #{tpu_custom_call.1} parent=1 // pred_region
      %90 = vsyncadd [#allocation3], 0
      %s92 = sshll.u32 %s3, 4
      %s93 = int_to_ptr.hbm [resolvable:$true] %s92
      %s94 = sshll.u32 [#allocation2], 4
      %s95 = int_to_ptr.vmem [resolvable:$true] %s94
      %97 = dma.hbm_to_vmem [thread:$0]  %s93, 32, %s95, [#allocation3]
    $region9: #{tpu_custom_call.1} parent=1 // pred_fallthru
      _
    // Predicated region
    $region10: #{tpu_custom_call.1} parent=1 // pred_check
      _
    $region11: #{tpu_custom_call.1} parent=1 // pred_check_branch
      %99 = sbr.rel (0) target = $region13
    $region12: #{tpu_custom_call.1} parent=1 // pred_region
      _
    $region13: #{tpu_custom_call.1} parent=1 // pred_fallthru
      _
    // Predicated region
    $region14: #{tpu_custom_call.1} parent=1 // pred_check
      _
    $region15: #{tpu_custom_call.1} parent=1 // pred_check_branch
      %101 = sbr.rel (0) target = $region17
    $region16: #{tpu_custom_call.1} parent=1 // pred_region
      %103 = vsyncadd [#allocation6], 0
      %s104 = sshll.u32 %s7, 4
      %s105 = int_to_ptr.hbm [resolvable:$true] %s104
      %s106 = sshll.u32 [#allocation5], 4
      %s107 = int_to_ptr.vmem [resolvable:$true] %s106
      %112 = dma.hbm_to_vmem [thread:$0]  %s105, 256, %s107, [#allocation6], 128, 128, 8
    $region17: #{tpu_custom_call.1} parent=1 // pred_fallthru
      _
    // Predicated region
    $region18: #{tpu_custom_call.1} parent=1 // pred_check
      _
    $region19: #{tpu_custom_call.1} parent=1 // pred_check_branch
      %114 = sbr.rel (0) target = $region21
    $region20: #{tpu_custom_call.1} parent=1 // pred_region
      %116 = vsyncadd [#allocation6], 0
      %s118 = sshll.u32 %s9, 4
      %s119 = int_to_ptr.hbm [resolvable:$true] %s118
      %s120 = sshll.u32 [#allocation7], 4
      %s121 = int_to_ptr.vmem [resolvable:$true] %s120
      %123 = dma.hbm_to_vmem [thread:$0]  %s119, 32, %s121, [#allocation6]
    $region21: #{tpu_custom_call.1} parent=1 // pred_fallthru
      _
    // Predicated region
    $region22: #{tpu_custom_call.1} parent=1 // pred_check
      _
    $region23: #{tpu_custom_call.1} parent=1 // pred_check_branch
      %125 = sbr.rel (0) target = $region25
    $region24: #{tpu_custom_call.1} parent=1 // pred_region
      %127 = vsyncadd [#allocation9], 0
      %s129 = sshll.u32 %s11, 4
      %s130 = int_to_ptr.hbm [resolvable:$true] %s129
      %s131 = sshll.u32 [#allocation8], 4
      %s132 = int_to_ptr.vmem [resolvable:$true] %s131
      %134 = dma.hbm_to_vmem [thread:$0]  %s130, 32, %s132, [#allocation9]
    $region25: #{tpu_custom_call.1} parent=1 // pred_fallthru
      _
    // Predicated region
    $region26: #{tpu_custom_call.1} parent=1 // pred_check
      _
    $region27: #{tpu_custom_call.1} parent=1 // pred_check_branch
      %136 = sbr.rel (0) target = $region29
    $region28: #{tpu_custom_call.1} parent=1 // pred_region
      %138 = vsyncadd [#allocation9], 0
      %s140 = sshll.u32 %s13, 4
      %s141 = int_to_ptr.hbm [resolvable:$true] %s140
      %s142 = sshll.u32 [#allocation10], 4
      %s143 = int_to_ptr.vmem [resolvable:$true] %s142
      %145 = dma.hbm_to_vmem [thread:$0]  %s141, 32, %s143, [#allocation9]
    $region29: #{tpu_custom_call.1} parent=1 // pred_fallthru
      _
    // Predicated region
    $region30: #{tpu_custom_call.1} parent=1 // pred_check
      _
    $region31: #{tpu_custom_call.1} parent=1 // pred_check_branch
      %147 = sbr.rel (0) target = $region33
    $region32: #{tpu_custom_call.1} parent=1 // pred_region
      %149 = vsyncadd [#allocation12], 0
      %s151 = sshll.u32 %s15, 4
      %s152 = int_to_ptr.hbm [resolvable:$true] %s151
      %s153 = sshll.u32 [#allocation11], 4
      %s154 = int_to_ptr.vmem [resolvable:$true] %s153
      %156 = dma.hbm_to_vmem [thread:$0]  %s152, 32, %s154, [#allocation12]
    $region33: #{tpu_custom_call.1} parent=1 // pred_fallthru
      _
    // Predicated region
    $region34: #{tpu_custom_call.1} parent=1 // pred_check
      _
    $region35: #{tpu_custom_call.1} parent=1 // pred_check_branch
      %158 = sbr.rel (0) target = $region37
    $region36: #{tpu_custom_call.1} parent=1 // pred_region
      %160 = vsyncadd [#allocation12], 0
      %s162 = sshll.u32 %s17, 4
      %s163 = int_to_ptr.hbm [resolvable:$true] %s162
      %s164 = sshll.u32 [#allocation13], 4
      %s165 = int_to_ptr.vmem [resolvable:$true] %s164
      %167 = dma.hbm_to_vmem [thread:$0]  %s163, 32, %s165, [#allocation12]
    $region37: #{tpu_custom_call.1} parent=1 // pred_fallthru
      _
    // Predicated region
    $region38: #{tpu_custom_call.1} parent=1 // pred_check
      _
    $region39: #{tpu_custom_call.1} parent=1 // pred_check_branch
      %169 = sbr.rel (0) target = $region41
    $region40: #{tpu_custom_call.1} parent=1 // pred_region
      _
    $region41: #{tpu_custom_call.1} parent=1 // pred_fallthru
      _
    // Predicated region
    $region42: #{tpu_custom_call.1} parent=1 // pred_check
      _
    $region43: #{tpu_custom_call.1} parent=1 // pred_check_branch
      %171 = sbr.rel (0) target = $region45
    $region44: #{tpu_custom_call.1} parent=1 // pred_region
      _
    $region45: #{tpu_custom_call.1} parent=1 // pred_fallthru
      _
    // Predicated region
    $region46: #{tpu_custom_call.1} parent=1 // pred_check
      _
    $region47: #{tpu_custom_call.1} parent=1 // pred_check_branch
      %173 = sbr.rel (0) target = $region49
    $region48: #{tpu_custom_call.1} parent=1 // pred_region
      _
    $region49: #{tpu_custom_call.1} parent=1 // pred_fallthru
      _
    // Predicated region
    $region50: #{tpu_custom_call.1} parent=1 // pred_check
      _
    $region51: #{tpu_custom_call.1} parent=1 // pred_check_branch
      %175 = sbr.rel (0) target = $region53
    $region52: #{tpu_custom_call.1} parent=1 // pred_region
      %177 = vsyncadd [#allocation15], 0
      %s178 = sshll.u32 %s25, 4
      %s179 = int_to_ptr.hbm [resolvable:$true] %s178
      %s180 = sshll.u32 [#allocation14], 4
      %s181 = int_to_ptr.vmem [resolvable:$true] %s180
      %186 = dma.hbm_to_vmem [thread:$0]  %s179, 512, %s181, [#allocation15], 128, 128, 8
    $region53: #{tpu_custom_call.1} parent=1 // pred_fallthru
      _
    // Predicated region
    $region54: #{tpu_custom_call.1} parent=1 // pred_check
      _
    $region55: #{tpu_custom_call.1} parent=1 // pred_check_branch
      %188 = sbr.rel (0) target = $region57
    $region56: #{tpu_custom_call.1} parent=1 // pred_region
      %190 = vsyncadd [#allocation15], 0
      %s191 = sshll.u32 %s27, 4
      %s192 = int_to_ptr.hbm [resolvable:$true] %s191
      %s193 = sshll.u32 [#allocation16], 4
      %s194 = int_to_ptr.vmem [resolvable:$true] %s193
      %199 = dma.hbm_to_vmem [thread:$0]  %s192, 512, %s194, [#allocation15], 128, 128, 8
    $region57: #{tpu_custom_call.1} parent=1 // pred_fallthru
      _
    // Predicated region
    $region58: #{tpu_custom_call.1} parent=1 // pred_check
      _
    $region59: #{tpu_custom_call.1} parent=1 // pred_check_branch
      %201 = sbr.rel (0) target = $region61
    $region60: #{tpu_custom_call.1} parent=1 // pred_region
      %203 = vsyncadd [#allocation18], 0
      %s205 = sshll.u32 %s29, 4
      %s206 = int_to_ptr.hbm [resolvable:$true] %s205
      %s207 = sshll.u32 [#allocation17], 4
      %s208 = int_to_ptr.vmem [resolvable:$true] %s207
      %210 = dma.hbm_to_vmem [thread:$0]  %s206, 16, %s208, [#allocation18]
    $region61: #{tpu_custom_call.1} parent=1 // pred_fallthru
      _
    // Predicated region
    $region62: #{tpu_custom_call.1} parent=1 // pred_check
      _
    $region63: #{tpu_custom_call.1} parent=1 // pred_check_branch
      %212 = sbr.rel (0) target = $region65
    $region64: #{tpu_custom_call.1} parent=1 // pred_region
      %214 = vsyncadd [#allocation18], 0
      %s215 = sshll.u32 %s31, 4
      %s216 = int_to_ptr.hbm [resolvable:$true] %s215
      %s217 = sshll.u32 [#allocation19], 4
      %s218 = int_to_ptr.vmem [resolvable:$true] %s217
      %223 = dma.hbm_to_vmem [thread:$0]  %s216, 512, %s218, [#allocation18], 128, 128, 8
    $region65: #{tpu_custom_call.1} parent=1 // pred_fallthru
      _
    // Predicated region
    $region66: #{tpu_custom_call.1} parent=1 // pred_check
      _
    $region67: #{tpu_custom_call.1} parent=1 // pred_check_branch
      %225 = sbr.rel (0) target = $region69
    $region68: #{tpu_custom_call.1} parent=1 // pred_region
      %227 = vsyncadd [#allocation21], 0
      %s228 = sshll.u32 %s33, 4
      %s229 = int_to_ptr.hbm [resolvable:$true] %s228
      %s230 = sshll.u32 [#allocation20], 4
      %s231 = int_to_ptr.vmem [resolvable:$true] %s230
      %236 = dma.hbm_to_vmem [thread:$0]  %s229, 512, %s231, [#allocation21], 128, 128, 8
    $region69: #{tpu_custom_call.1} parent=1 // pred_fallthru
      _
    // Predicated region
    $region70: #{tpu_custom_call.1} parent=1 // pred_check
      _
    $region71: #{tpu_custom_call.1} parent=1 // pred_check_branch
      %238 = sbr.rel (0) target = $region73
    $region72: #{tpu_custom_call.1} parent=1 // pred_region
      %240 = vsyncadd [#allocation21], 0
      %s242 = sshll.u32 %s35, 4
      %s243 = int_to_ptr.hbm [resolvable:$true] %s242
      %s244 = sshll.u32 [#allocation22], 4
      %s245 = int_to_ptr.vmem [resolvable:$true] %s244
      %247 = dma.hbm_to_vmem [thread:$0]  %s243, 16, %s245, [#allocation21]
    $region73: #{tpu_custom_call.1} parent=1 // pred_fallthru
      _
    // Predicated region
    $region74: #{tpu_custom_call.1} parent=1 // pred_check
      _
    $region75: #{tpu_custom_call.1} parent=1 // pred_check_branch
      %249 = sbr.rel (0) target = $region77
    $region76: #{tpu_custom_call.1} parent=1 // pred_region
      %251 = vsyncadd [#allocation24], 0
      %s253 = sshll.u32 %s37, 4
      %s254 = int_to_ptr.hbm [resolvable:$true] %s253
      %s255 = sshll.u32 [#allocation23], 4
      %s256 = int_to_ptr.vmem [resolvable:$true] %s255
      %258 = dma.hbm_to_vmem [thread:$0]  %s254, 16, %s256, [#allocation24]
    $region77: #{tpu_custom_call.1} parent=1 // pred_fallthru
      _
    // Predicated region
    $region78: #{tpu_custom_call.1} parent=1 // pred_check
      _
    $region79: #{tpu_custom_call.1} parent=1 // pred_check_branch
      %260 = sbr.rel (0) target = $region81
    $region80: #{tpu_custom_call.1} parent=1 // pred_region
      %262 = vsyncadd [#allocation24], 0
      %s264 = sshll.u32 %s39, 4
      %s265 = int_to_ptr.hbm [resolvable:$true] %s264
      %s266 = sshll.u32 [#allocation25], 4
      %s267 = int_to_ptr.vmem [resolvable:$true] %s266
      %269 = dma.hbm_to_vmem [thread:$0]  %s265, 16, %s267, [#allocation24]
    $region81: #{tpu_custom_call.1} parent=1 // pred_fallthru
      _
    // Predicated region
    $region82: #{tpu_custom_call.1} parent=1 // pred_check
      _
    $region83: #{tpu_custom_call.1} parent=1 // pred_check_branch
      %271 = sbr.rel (0) target = $region85
    $region84: #{tpu_custom_call.1} parent=1 // pred_region
      _
    $region85: #{tpu_custom_call.1} parent=1 // pred_fallthru
      _
    // Predicated region
    $region86: #{tpu_custom_call.1} parent=1 // pred_check
      _
    $region87: #{tpu_custom_call.1} parent=1 // pred_check_branch
      %273 = sbr.rel (0) target = $region89
    $region88: #{tpu_custom_call.1} parent=1 // pred_region
      %275 = vsyncadd [#allocation27], 0
      %s276 = sshll.u32 %s43, 4
      %s277 = int_to_ptr.hbm [resolvable:$true] %s276
      %s278 = sshll.u32 [#allocation26], 4
      %s279 = int_to_ptr.vmem [resolvable:$true] %s278
      %284 = dma.hbm_to_vmem [thread:$0]  %s277, 512, %s279, [#allocation27], 128, 128, 8
    $region89: #{tpu_custom_call.1} parent=1 // pred_fallthru
      _
    // Predicated region
    $region90: #{tpu_custom_call.1} parent=1 // pred_check
      _
    $region91: #{tpu_custom_call.1} parent=1 // pred_check_branch
      %286 = sbr.rel (0) target = $region93
    $region92: #{tpu_custom_call.1} parent=1 // pred_region
      _
    $region93: #{tpu_custom_call.1} parent=1 // pred_fallthru
      _
    // Predicated region
    $region94: #{tpu_custom_call.1} parent=1 // pred_check
      _
    $region95: #{tpu_custom_call.1} parent=1 // pred_check_branch
      %288 = sbr.rel (0) target = $region97
    $region96: #{tpu_custom_call.1} parent=1 // pred_region
      %290 = vsyncadd [#allocation27], 0
      %s291 = sshll.u32 %s47, 4
      %s292 = int_to_ptr.hbm [resolvable:$true] %s291
      %s293 = sshll.u32 [#allocation28], 4
      %s294 = int_to_ptr.vmem [resolvable:$true] %s293
      %299 = dma.hbm_to_vmem [thread:$0]  %s292, 1024, %s294, [#allocation27], 128, 128, 8
    $region97: #{tpu_custom_call.1} parent=1 // pred_fallthru
      _
    // Predicated region
    $region98: #{tpu_custom_call.1} parent=1 // pred_check
      _
    $region99: #{tpu_custom_call.1} parent=1 // pred_check_branch
      %301 = sbr.rel (0) target = $region101
    $region100: #{tpu_custom_call.1} parent=1 // pred_region
      _
    $region101: #{tpu_custom_call.1} parent=1 // pred_fallthru
      _
    // Predicated region
    $region102: #{tpu_custom_call.1} parent=1 // pred_check
      _
    $region103: #{tpu_custom_call.1} parent=1 // pred_check_branch
      %303 = sbr.rel (0) target = $region105
    $region104: #{tpu_custom_call.1} parent=1 // pred_region
      _
    $region105: #{tpu_custom_call.1} parent=1 // pred_fallthru
      _
    // Predicated region
    $region106: #{tpu_custom_call.1} parent=1 // pred_check
      _
    $region107: #{tpu_custom_call.1} parent=1 // pred_check_branch
      %305 = sbr.rel (0) target = $region109
    $region108: #{tpu_custom_call.1} parent=1 // pred_region
      _
    $region109: #{tpu_custom_call.1} parent=1 // pred_fallthru
      _
    // Predicated region
    $region110: #{tpu_custom_call.1} parent=1 // pred_check
      _
    $region111: #{tpu_custom_call.1} parent=1 // pred_check_branch
      %307 = sbr.rel (0) target = $region113
    $region112: #{tpu_custom_call.1} parent=1 // pred_region
      _
    $region113: #{tpu_custom_call.1} parent=1 // pred_fallthru
      _
    // Predicated region
    $region114: #{tpu_custom_call.1} parent=1 // pred_check
      _
    $region115: #{tpu_custom_call.1} parent=1 // pred_check_branch
      %309 = sbr.rel (0) target = $region117
    $region116: #{tpu_custom_call.1} parent=1 // pred_region
      _
    $region117: #{tpu_custom_call.1} parent=1 // pred_fallthru
      _
    // Predicated region
    $region118: #{tpu_custom_call.1} parent=1 // pred_check
      _
    $region119: #{tpu_custom_call.1} parent=1 // pred_check_branch
      %311 = sbr.rel (0) target = $region121
    $region120: #{tpu_custom_call.1} parent=1 // pred_region
      %313 = dma.done [#allocation3], 32
    $region121: #{tpu_custom_call.1} parent=1 // pred_fallthru
      _
    // Predicated region
    $region122: #{tpu_custom_call.1} parent=1 // pred_check
      _
    $region123: #{tpu_custom_call.1} parent=1 // pred_check_branch
      %315 = sbr.rel (0) target = $region125
    $region124: #{tpu_custom_call.1} parent=1 // pred_region
      %317 = dma.done [#allocation6], 256
    $region125: #{tpu_custom_call.1} parent=1 // pred_fallthru
      _
    // Predicated region
    $region126: #{tpu_custom_call.1} parent=1 // pred_check
      _
    $region127: #{tpu_custom_call.1} parent=1 // pred_check_branch
      %319 = sbr.rel (0) target = $region129
    $region128: #{tpu_custom_call.1} parent=1 // pred_region
      %321 = dma.done [#allocation6], 32
    $region129: #{tpu_custom_call.1} parent=1 // pred_fallthru
      _
    // Predicated region
    $region130: #{tpu_custom_call.1} parent=1 // pred_check
      _
    $region131: #{tpu_custom_call.1} parent=1 // pred_check_branch
      %323 = sbr.rel (0) target = $region133
    $region132: #{tpu_custom_call.1} parent=1 // pred_region
      %325 = dma.done [#allocation9], 32
    $region133: #{tpu_custom_call.1} parent=1 // pred_fallthru
      _
    // Predicated region
    $region134: #{tpu_custom_call.1} parent=1 // pred_check
      _
    $region135: #{tpu_custom_call.1} parent=1 // pred_check_branch
      %327 = sbr.rel (0) target = $region137
    $region136: #{tpu_custom_call.1} parent=1 // pred_region
      %329 = dma.done [#allocation9], 32
    $region137: #{tpu_custom_call.1} parent=1 // pred_fallthru
      _
    // Predicated region
    $region138: #{tpu_custom_call.1} parent=1 // pred_check
      _
    $region139: #{tpu_custom_call.1} parent=1 // pred_check_branch
      %331 = sbr.rel (0) target = $region141
    $region140: #{tpu_custom_call.1} parent=1 // pred_region
      %333 = dma.done [#allocation12], 32
    $region141: #{tpu_custom_call.1} parent=1 // pred_fallthru
      _
    // Predicated region
    $region142: #{tpu_custom_call.1} parent=1 // pred_check
      _
    $region143: #{tpu_custom_call.1} parent=1 // pred_check_branch
      %335 = sbr.rel (0) target = $region145
    $region144: #{tpu_custom_call.1} parent=1 // pred_region
      %337 = dma.done [#allocation12], 32
    $region145: #{tpu_custom_call.1} parent=1 // pred_fallthru
      _
    // Predicated region
    $region146: #{tpu_custom_call.1} parent=1 // pred_check
      _
    $region147: #{tpu_custom_call.1} parent=1 // pred_check_branch
      %339 = sbr.rel (0) target = $region149
    $region148: #{tpu_custom_call.1} parent=1 // pred_region
      %341 = dma.done [#allocation15], 512
    $region149: #{tpu_custom_call.1} parent=1 // pred_fallthru
      _
    // Predicated region
    $region150: #{tpu_custom_call.1} parent=1 // pred_check
      _
    $region151: #{tpu_custom_call.1} parent=1 // pred_check_branch
      %343 = sbr.rel (0) target = $region153
    $region152: #{tpu_custom_call.1} parent=1 // pred_region
      %345 = dma.done [#allocation15], 512
    $region153: #{tpu_custom_call.1} parent=1 // pred_fallthru
      _
    // Predicated region
    $region154: #{tpu_custom_call.1} parent=1 // pred_check
      _
    $region155: #{tpu_custom_call.1} parent=1 // pred_check_branch
      %347 = sbr.rel (0) target = $region157
    $region156: #{tpu_custom_call.1} parent=1 // pred_region
      %349 = dma.done [#allocation18], 16
    $region157: #{tpu_custom_call.1} parent=1 // pred_fallthru
      _
    // Predicated region
    $region158: #{tpu_custom_call.1} parent=1 // pred_check
      _
    $region159: #{tpu_custom_call.1} parent=1 // pred_check_branch
      %351 = sbr.rel (0) target = $region161
    $region160: #{tpu_custom_call.1} parent=1 // pred_region
      %353 = dma.done [#allocation18], 512
    $region161: #{tpu_custom_call.1} parent=1 // pred_fallthru
      _
    // Predicated region
    $region162: #{tpu_custom_call.1} parent=1 // pred_check
      _
    $region163: #{tpu_custom_call.1} parent=1 // pred_check_branch
      %355 = sbr.rel (0) target = $region165
    $region164: #{tpu_custom_call.1} parent=1 // pred_region
      %357 = dma.done [#allocation21], 512
    $region165: #{tpu_custom_call.1} parent=1 // pred_fallthru
      _
    // Predicated region
    $region166: #{tpu_custom_call.1} parent=1 // pred_check
      _
    $region167: #{tpu_custom_call.1} parent=1 // pred_check_branch
      %359 = sbr.rel (0) target = $region169
    $region168: #{tpu_custom_call.1} parent=1 // pred_region
      %361 = dma.done [#allocation21], 16
    $region169: #{tpu_custom_call.1} parent=1 // pred_fallthru
      _
    // Predicated region
    $region170: #{tpu_custom_call.1} parent=1 // pred_check
      _
    $region171: #{tpu_custom_call.1} parent=1 // pred_check_branch
      %363 = sbr.rel (0) target = $region173
    $region172: #{tpu_custom_call.1} parent=1 // pred_region
      %365 = dma.done [#allocation24], 16
    $region173: #{tpu_custom_call.1} parent=1 // pred_fallthru
      _
    // Predicated region
    $region174: #{tpu_custom_call.1} parent=1 // pred_check
      _
    $region175: #{tpu_custom_call.1} parent=1 // pred_check_branch
      %367 = sbr.rel (0) target = $region177
    $region176: #{tpu_custom_call.1} parent=1 // pred_region
      %369 = dma.done [#allocation24], 16
    $region177: #{tpu_custom_call.1} parent=1 // pred_fallthru
      _
    // Predicated region
    $region178: #{tpu_custom_call.1} parent=1 // pred_check
      _
    $region179: #{tpu_custom_call.1} parent=1 // pred_check_branch
      %371 = sbr.rel (0) target = $region181
    $region180: #{tpu_custom_call.1} parent=1 // pred_region
      %373 = dma.done [#allocation27], 512
    $region181: #{tpu_custom_call.1} parent=1 // pred_fallthru
      _
    // Predicated region
    $region182: #{tpu_custom_call.1} parent=1 // pred_check
      _
    $region183: #{tpu_custom_call.1} parent=1 // pred_check_branch
      %375 = sbr.rel (0) target = $region185
    $region184: #{tpu_custom_call.1} parent=1 // pred_region
      %377 = dma.done [#allocation27], 1024
    $region185: #{tpu_custom_call.1} parent=1 // pred_fallthru
      _
    %v378 = vld [vmem:[%s1] sm:$0x3]
    %v379 = vld [vmem:[#allocation2] sm:$0x3]
    %v380 = vld [vmem:[#allocation10] sm:$0x3]
    %v381 = vld [vmem:[#allocation11] sm:$0x3]
    %v382 = vld [vmem:[#allocation13] sm:$0x3]
    %v383 = vld [vmem:[#allocation8] sm:$0x3]
    %v384 = vld [vmem:[%s19] sm:$0xff]
    %v385 = vld [vmem:[%s19 + $0x8] sm:$0xff]
    %v386 = vld [vmem:[%s19 + $0x10] sm:$0xff]
    %v387 = vld [vmem:[%s19 + $0x18] sm:$0xff]
    %v388 = vld [vmem:[%s21] sm:$0xff]
    %v389 = vld [vmem:[%s21 + $0x8] sm:$0xff]
    %v390 = vld [vmem:[%s21 + $0x10] sm:$0xff]
    %v391 = vld [vmem:[%s21 + $0x18] sm:$0xff]
    %v392 = vld [vmem:[%s21 + $0x20] sm:$0xff]
    %v393 = vld [vmem:[%s21 + $0x28] sm:$0xff]
    %v394 = vld [vmem:[%s21 + $0x30] sm:$0xff]
    %v395 = vld [vmem:[%s21 + $0x38] sm:$0xff]
    %vm396 = vcmask 523264
    %v398 = vsel %vm396, %v380, 0
    %400 = vmatpush.msra.mxu0 0.0
    %401 = vmatpush.msra.mxu0 0.0
    %402 = vmatpush.msra.mxu0 0.0
    %403 = vmatpush.msra.mxu0 0.0
    %404 = vmatpush.msra.mxu0 0.0
    %405 = vmatpush.msra.mxu0 0.0
    %406 = vmatpush.msra.mxu0 0.0
    %407 = vmatpush.msra.mxu0 0.0
    %408 = vmatpush.msra.mxu0 %v395
    %409 = vmatpush.msra.mxu0 %v394
    %410 = vmatpush.msra.mxu0 %v393
    %411 = vmatpush.msra.mxu0 %v392
    %412 = vmatpush.msra.mxu0 %v391
    %413 = vmatpush.msra.mxu0 %v390
    %414 = vmatpush.msra.mxu0 %v389
    %415 = vmatpush.msra.mxu0 %v388
    %416 = vmatmul.f32.gmra.mxu0 %v398
    %v417 = vpop.f32.mrf.mxu0
    %v418 = vadd.f32 0.0, %v417
    %419 = vdwg.mxu0
    %vm420 = vcmask 261120
    %v422 = vsel %vm420, %v378, 0
    %424 = vmatpush.msra.mxu0 0.0
    %425 = vmatpush.msra.mxu0 0.0
    %426 = vmatpush.msra.mxu0 0.0
    %427 = vmatpush.msra.mxu0 0.0
    %428 = vmatpush.msra.mxu0 0.0
    %429 = vmatpush.msra.mxu0 0.0
    %430 = vmatpush.msra.mxu0 0.0
    %431 = vmatpush.msra.mxu0 0.0
    %432 = vmatpush.msra.mxu0 0.0
    %433 = vmatpush.msra.mxu0 0.0
    %434 = vmatpush.msra.mxu0 0.0
    %435 = vmatpush.msra.mxu0 0.0
    %436 = vmatpush.msra.mxu0 %v387
    %437 = vmatpush.msra.mxu0 %v386
    %438 = vmatpush.msra.mxu0 %v385
    %439 = vmatpush.msra.mxu0 %v384
    %440 = vmatmul.f32.gmra.mxu0 %v422
    %v441 = vpop.f32.mrf.mxu0
    %v442 = vadd.f32 %v418, %v441
    %443 = vdwg.mxu0
    %v444 = vld [vmem:[%s23] sm:$0x1]
    %v446 = vperm.slane %v444, 0
    %v448 = vadd.f32 %v442, %v446
    %v449 = vld [vmem:[#allocation14] sm:$0xff]
    %v450 = vld [vmem:[#allocation14 + $0x8] sm:$0xff]
    %v451 = vld [vmem:[#allocation14 + $0x10] sm:$0xff]
    %v452 = vld [vmem:[#allocation14 + $0x18] sm:$0xff]
    %v453 = vld [vmem:[#allocation16] sm:$0xff]
    %v454 = vld [vmem:[#allocation16 + $0x8] sm:$0xff]
    %v455 = vld [vmem:[#allocation16 + $0x10] sm:$0xff]
    %v456 = vld [vmem:[#allocation16 + $0x18] sm:$0xff]
    %v458 = vsel %vm420, %v381, 0
    %460 = vmatpush.msra.mxu0 0.0
    %461 = vmatpush.msra.mxu0 0.0
    %462 = vmatpush.msra.mxu0 0.0
    %463 = vmatpush.msra.mxu0 0.0
    %464 = vmatpush.msra.mxu0 0.0
    %465 = vmatpush.msra.mxu0 0.0
    %466 = vmatpush.msra.mxu0 0.0
    %467 = vmatpush.msra.mxu0 0.0
    %468 = vmatpush.msra.mxu0 0.0
    %469 = vmatpush.msra.mxu0 0.0
    %470 = vmatpush.msra.mxu0 0.0
    %471 = vmatpush.msra.mxu0 0.0
    %472 = vmatpush.msra.mxu0 %v456
    %473 = vmatpush.msra.mxu0 %v455
    %474 = vmatpush.msra.mxu0 %v454
    %475 = vmatpush.msra.mxu0 %v453
    %476 = vmatmul.f32.gmra.mxu0 %v458
    %v477 = vpop.f32.mrf.mxu0
    %v478 = vadd.f32 0.0, %v477
    %479 = vdwg.mxu0
    %v481 = vsel %vm420, %v448, 0
    %483 = vmatpush.msra.mxu0 0.0
    %484 = vmatpush.msra.mxu0 0.0
    %485 = vmatpush.msra.mxu0 0.0
    %486 = vmatpush.msra.mxu0 0.0
    %487 = vmatpush.msra.mxu0 0.0
    %488 = vmatpush.msra.mxu0 0.0
    %489 = vmatpush.msra.mxu0 0.0
    %490 = vmatpush.msra.mxu0 0.0
    %491 = vmatpush.msra.mxu0 0.0
    %492 = vmatpush.msra.mxu0 0.0
    %493 = vmatpush.msra.mxu0 0.0
    %494 = vmatpush.msra.mxu0 0.0
    %495 = vmatpush.msra.mxu0 %v452
    %496 = vmatpush.msra.mxu0 %v451
    %497 = vmatpush.msra.mxu0 %v450
    %498 = vmatpush.msra.mxu0 %v449
    %499 = vmatmul.f32.gmra.mxu0 %v481
    %v500 = vpop.f32.mrf.mxu0
    %v501 = vadd.f32 %v478, %v500
    %502 = vdwg.mxu0
    %v503 = vld [vmem:[#allocation17] sm:$0x1]
    %v505 = vperm.slane %v503, 0
    %v507 = vadd.f32 %v501, %v505
    %v508 = vxor.u32 %v507, 2147483648
    %v509 = vmul.f32 %v508, 1.442695
    %v510 = vpow.pop %v509
    %v511 = vadd.f32 %v510, 1.0
    %v512 = vrcp.pop %v511
    %v513 = vmul.f32 %v511, %v512
    %v514 = vsub.f32 1.0, %v513
    %v515 = vmul.f32 %v512, %v514
    %v516 = vadd.f32 %v512, %v515
    %vm517 = vweird.f32 %v511
    %vm518 = vweird.f32 %v512
    %vm519 = vmor %vm517, %vm518
    %v520 = vsel %vm519, %v512, %v516
    %v521 = vand.u32 2147483647, %v511
    %vm522 = vcmp.eq.f32.partialorder %v521, 8.507059e+37
    %v523 = vand.u32 %v511, 2147483648
    %v524 = vor.u32 1.1754944e-38, %v523
    %v525 = vsel %vm522, %v524, %v520
    %v526 = vmul.f32 1.0, %v525
    %v527 = vtanh.pop %v507
    %529 = vrot.lane.b32.xlu0 %v382, 32
    %v530 = vpop.permute.xlu0 %529
    %v532 = vmul.f32 %v526, %v530
    %534 = vrot.lane.b32.xlu0 %v527, 64
    %v535 = vpop.permute.xlu0 %534
    %v537 = vmul.f32 %v526, %v535
    %539 = vrot.lane.b32.xlu0 %v537, 32
    %v540 = vpop.permute.xlu0 %539
    %v542 = vadd.f32 %v532, %v540
    %v543 = vtanh.pop %v542
    %545 = vrot.lane.b32.xlu0 %v543, 64
    %v546 = vpop.permute.xlu0 %545
    %v548 = vmul.f32 %v526, %v546
    %v549 = vld [vmem:[%s5] sm:$0xff]
    %v550 = vld [vmem:[%s5 + $0x8] sm:$0xff]
    %v551 = vld [vmem:[#allocation19] sm:$0xff]
    %v552 = vld [vmem:[#allocation19 + $0x8] sm:$0xff]
    %v553 = vld [vmem:[#allocation19 + $0x10] sm:$0xff]
    %v554 = vld [vmem:[#allocation19 + $0x18] sm:$0xff]
    %v555 = vld [vmem:[#allocation20] sm:$0xff]
    %v556 = vld [vmem:[#allocation20 + $0x8] sm:$0xff]
    %v557 = vld [vmem:[#allocation20 + $0x10] sm:$0xff]
    %v558 = vld [vmem:[#allocation20 + $0x18] sm:$0xff]
    %560 = vrot.lane.b32.xlu0 %v542, 96
    %v561 = vpop.permute.xlu0 %560
    %v562 = vsel %vm420, %v561, 0
    %564 = vmatpush.msra.mxu0 0.0
    %565 = vmatpush.msra.mxu0 0.0
    %566 = vmatpush.msra.mxu0 0.0
    %567 = vmatpush.msra.mxu0 0.0
    %568 = vmatpush.msra.mxu0 0.0
    %569 = vmatpush.msra.mxu0 0.0
    %570 = vmatpush.msra.mxu0 0.0
    %571 = vmatpush.msra.mxu0 0.0
    %572 = vmatpush.msra.mxu0 0.0
    %573 = vmatpush.msra.mxu0 0.0
    %574 = vmatpush.msra.mxu0 0.0
    %575 = vmatpush.msra.mxu0 0.0
    %576 = vmatpush.msra.mxu0 %v558
    %577 = vmatpush.msra.mxu0 %v557
    %578 = vmatpush.msra.mxu0 %v556
    %579 = vmatpush.msra.mxu0 %v555
    %580 = vmatmul.f32.gmra.mxu0 %v562
    %v581 = vpop.f32.mrf.mxu0
    %v582 = vadd.f32 0.0, %v581
    %583 = vdwg.mxu0
    %585 = vrot.lane.b32.xlu0 %v548, 32
    %v586 = vpop.permute.xlu0 %585
    %v587 = vsel %vm420, %v586, 0
    %589 = vmatpush.msra.mxu0 0.0
    %590 = vmatpush.msra.mxu0 0.0
    %591 = vmatpush.msra.mxu0 0.0
    %592 = vmatpush.msra.mxu0 0.0
    %593 = vmatpush.msra.mxu0 0.0
    %594 = vmatpush.msra.mxu0 0.0
    %595 = vmatpush.msra.mxu0 0.0
    %596 = vmatpush.msra.mxu0 0.0
    %597 = vmatpush.msra.mxu0 0.0
    %598 = vmatpush.msra.mxu0 0.0
    %599 = vmatpush.msra.mxu0 0.0
    %600 = vmatpush.msra.mxu0 0.0
    %601 = vmatpush.msra.mxu0 %v554
    %602 = vmatpush.msra.mxu0 %v553
    %603 = vmatpush.msra.mxu0 %v552
    %604 = vmatpush.msra.mxu0 %v551
    %605 = vmatmul.f32.gmra.mxu0 %v587
    %v606 = vpop.f32.mrf.mxu0
    %v607 = vadd.f32 %v582, %v606
    %608 = vdwg.mxu0
    %v609 = vld [vmem:[#allocation22] sm:$0x1]
    %v611 = vperm.slane %v609, 0
    %v613 = vadd.f32 %v607, %v611
    %v614 = vld [vmem:[#allocation5] sm:$0xff]
    %v615 = vld [vmem:[#allocation5 + $0x8] sm:$0xff]
    %v617 = vrot.slane %v613, 1
    %v618 = vperm.slane %v613, 0
    %v619 = vperm.slane %v617, 0
    %v622 = vadd.f32 %v614, %v618
    %v623 = vadd.f32 %v615, %v619
    %v624 = vperm.slane %v383, 0
    %v625 = vlaneseq
    %v626 = vshrl.u32 %v625, 7
    %628 = vset.pattern.permute.xlu0 %v626
    %629 = vperm.xlu0 %628, %v624
    %v630 = vpop.permute.xlu0 %629
    %v631 = vperm.slane %v383, 1
    %v632 = vlaneseq
    %v633 = vshrl.u32 %v632, 7
    %635 = vset.pattern.permute.xlu0 %v633
    %636 = vperm.xlu0 %635, %v631
    %v637 = vpop.permute.xlu0 %636
    %v638 = vld [vmem:[#allocation23] sm:$0x1]
    %v640 = vperm.slane %v638, 0
    %v642 = vmul.f32 %v630, %v640
    %v643 = vmul.f32 %v637, %v640
    %v644 = vadd.f32 %v622, %v642
    %v645 = vadd.f32 %v623, %v643
    %v646 = vtanh.pop %v644
    %v647 = vtanh.pop %v645
    %v648 = vld [vmem:[#allocation25] sm:$0x1]
    %v650 = vperm.slane %v648, 0
    %v652 = vmul.f32 %v646, %v650
    %v653 = vmul.f32 %v647, %v650
    %v654 = vsel %vm396, %v652, 0.0
    %655 = vadd.xlane.f32.xlu0 %v654
    %v656 = vpop.xlane.xlu0 %655
    %v657 = vsel %vm396, %v653, 0.0
    %658 = vadd.xlane.f32.xlu0 %v657
    %v659 = vpop.xlane.xlu0 %658
    %v662 = vlaneseq
    %v663 = vand.u32 %v662, 127
    %v664 = vperm.slane %v656, %v663
    %v665 = vperm.slane %v659, %v663
    %vm666 = vcmask 1041409
    %v667 = vsel %vm666, %v665, %v664
    %vm669 = vcmask 58368
    %v670 = vsel %vm669, %v667, -inf
    %671 = vmax.xlane.f32.xlu0 %v670
    %v672 = vpop.xlane.xlu0 %671
    %v674 = vperm.slane %v672, 0
    %v675 = vperm.slane %v672, 1
    %v678 = vsub.f32 %v656, %v674
    %v679 = vsub.f32 %v659, %v675
    %v680 = vmul.f32 %v678, 1.442695
    %v681 = vpow.pop %v680
    %v682 = vmul.f32 %v679, 1.442695
    %v683 = vpow.pop %v682
    %686 = vset.pattern.permute.xlu0 0
    %687 = vperm.xlu0 %686, %v681
    %v688 = vpop.permute.xlu0 %687
    %689 = vset.pattern.permute.xlu0 0
    %690 = vperm.xlu0 %689, %v683
    %v691 = vpop.permute.xlu0 %690
    %v692 = vperm.slane %v688, %v663
    %v693 = vperm.slane %v691, %v663
    %v694 = vsel %vm666, %v693, %v692
    %v696 = vsel %vm669, %v694, 0.0
    %697 = vadd.xlane.f32.xlu0 %v696
    %v698 = vpop.xlane.xlu0 %697
    %v699 = vrcp.pop %v698
    %v701 = vperm.slane %v699, 0
    %v702 = vperm.slane %v699, 1
    %v705 = vmul.f32 %v681, %v701
    %v706 = vmul.f32 %v683, %v702
    %708 = vset.pattern.permute.xlu0 0
    %709 = vperm.xlu0 %708, %v705
    %v710 = vpop.permute.xlu0 %709
    %713 = vset.pattern.permute.xlu0 0
    %714 = vperm.xlu0 %713, %v706
    %v715 = vpop.permute.xlu0 %714
    %v717 = vmul.f32 %v710, %v549
    %v718 = vmul.f32 %v715, %v550
    %v719 = vsel %vm396, %v717, 0.0
    %v720 = vrot.slane %v719, 4
    %v721 = vadd.f32 %v719, %v720
    %v722 = vrot.slane %v721, 2
    %v723 = vadd.f32 %v721, %v722
    %v724 = vrot.slane %v723, 1
    %v725 = vadd.f32 %v723, %v724
    %v726 = vsel %vm396, %v718, 0.0
    %v727 = vrot.slane %v726, 4
    %v728 = vadd.f32 %v726, %v727
    %v729 = vrot.slane %v728, 2
    %v730 = vadd.f32 %v728, %v729
    %v731 = vrot.slane %v730, 1
    %v732 = vadd.f32 %v730, %v731
    %v733 = vld [vmem:[%s41] sm:$0xff]
    %v734 = vld [vmem:[%s41 + $0x8] sm:$0xff]
    %v735 = vld [vmem:[%s41 + $0x10] sm:$0xff]
    %v736 = vld [vmem:[%s41 + $0x18] sm:$0xff]
    %v737 = vld [vmem:[%s41 + $0x20] sm:$0xff]
    %v738 = vld [vmem:[%s41 + $0x28] sm:$0xff]
    %v739 = vld [vmem:[%s41 + $0x30] sm:$0xff]
    %v740 = vld [vmem:[%s41 + $0x38] sm:$0xff]
    %v741 = vld [vmem:[#allocation26] sm:$0xff]
    %v742 = vld [vmem:[#allocation26 + $0x8] sm:$0xff]
    %v743 = vld [vmem:[#allocation26 + $0x10] sm:$0xff]
    %v744 = vld [vmem:[#allocation26 + $0x18] sm:$0xff]
    %745 = vmatpush.msra.mxu0 0.0
    %746 = vmatpush.msra.mxu0 0.0
    %747 = vmatpush.msra.mxu0 0.0
    %748 = vmatpush.msra.mxu0 0.0
    %749 = vmatpush.msra.mxu0 0.0
    %750 = vmatpush.msra.mxu0 0.0
    %751 = vmatpush.msra.mxu0 0.0
    %752 = vmatpush.msra.mxu0 0.0
    %753 = vmatpush.msra.mxu0 0.0
    %754 = vmatpush.msra.mxu0 0.0
    %755 = vmatpush.msra.mxu0 0.0
    %756 = vmatpush.msra.mxu0 0.0
    %757 = vmatpush.msra.mxu0 %v744
    %758 = vmatpush.msra.mxu0 %v743
    %759 = vmatpush.msra.mxu0 %v742
    %760 = vmatpush.msra.mxu0 %v741
    %761 = vmatmul.f32.gmra.mxu0 %v587
    %v762 = vpop.f32.mrf.mxu0
    %v763 = vadd.f32 0.0, %v762
    %764 = vdwg.mxu0
    %v767 = vsel %vm666, %v732, %v725
    %v768 = vsel %vm396, %v767, 0
    %770 = vmatpush.msra.mxu0 0.0
    %771 = vmatpush.msra.mxu0 0.0
    %772 = vmatpush.msra.mxu0 0.0
    %773 = vmatpush.msra.mxu0 0.0
    %774 = vmatpush.msra.mxu0 0.0
    %775 = vmatpush.msra.mxu0 0.0
    %776 = vmatpush.msra.mxu0 0.0
    %777 = vmatpush.msra.mxu0 0.0
    %778 = vmatpush.msra.mxu0 %v740
    %779 = vmatpush.msra.mxu0 %v739
    %780 = vmatpush.msra.mxu0 %v738
    %781 = vmatpush.msra.mxu0 %v737
    %782 = vmatpush.msra.mxu0 %v736
    %783 = vmatpush.msra.mxu0 %v735
    %784 = vmatpush.msra.mxu0 %v734
    %785 = vmatpush.msra.mxu0 %v733
    %786 = vmatmul.f32.gmra.mxu0 %v768
    %v787 = vpop.f32.mrf.mxu0
    %v788 = vadd.f32 %v763, %v787
    %789 = vdwg.mxu0
    %v790 = vld [vmem:[%s45] sm:$0x1]
    %v792 = vperm.slane %v790, 0
    %v794 = vadd.f32 %v788, %v792
    %v795 = vld [vmem:[#allocation28] sm:$0xff]
    %v796 = vld [vmem:[#allocation28 + $0x8] sm:$0xff]
    %v797 = vld [vmem:[#allocation28 + $0x10] sm:$0xff]
    %v798 = vld [vmem:[#allocation28 + $0x18] sm:$0xff]
    %v799 = vld [vmem:[#allocation28 + $0x20] sm:$0xff]
    %v800 = vld [vmem:[#allocation28 + $0x28] sm:$0xff]
    %v801 = vld [vmem:[#allocation28 + $0x30] sm:$0xff]
    %v802 = vld [vmem:[#allocation28 + $0x38] sm:$0xff]
    %v803 = vld [vmem:[%s49] sm:$0x1]
    %v805 = vperm.slane %v803, 0
    %v808 = vsel %vm396, %v794, 0
    %810 = vmatpush.msra.mxu0 0.0
    %811 = vmatpush.msra.mxu0 0.0
    %812 = vmatpush.msra.mxu0 0.0
    %813 = vmatpush.msra.mxu0 0.0
    %814 = vmatpush.msra.mxu0 0.0
    %815 = vmatpush.msra.mxu0 0.0
    %816 = vmatpush.msra.mxu0 0.0
    %817 = vmatpush.msra.mxu0 0.0
    %818 = vmatpush.msra.mxu0 %v802
    %819 = vmatpush.msra.mxu0 %v801
    %820 = vmatpush.msra.mxu0 %v800
    %821 = vmatpush.msra.mxu0 %v799
    %822 = vmatpush.msra.mxu0 %v798
    %823 = vmatpush.msra.mxu0 %v797
    %824 = vmatpush.msra.mxu0 %v796
    %825 = vmatpush.msra.mxu0 %v795
    %826 = vmatmul.f32.gmra.mxu0 %v808
    %v827 = vpop.f32.mrf.mxu0
    %v828 = vadd.f32 %v805, %v827
    %829 = vdwg.mxu0
    %vm830 = vcmask 1041408
    %v831 = vsel %vm830, %v828, -inf
    %832 = vmax.xlane.f32.xlu0 %v831
    %v833 = vpop.xlane.xlu0 %832
    %v834 = vsub.f32 %v828, %v833
    %v835 = vmul.f32 %v834, 1.442695
    %v836 = vpow.pop %v835
    %v837 = vsel %vm830, %v836, 0.0
    %838 = vadd.xlane.f32.xlu0 %v837
    %v839 = vpop.xlane.xlu0 %838
    %v840 = vrcp.pop %v839
    %v841 = vmul.f32 %v836, %v840
    %v842 = vld [vmem:[%s51] sm:$0x1]
    %v844 = vperm.slane %v842, 0
    %v846 = vmul.f32 %v725, %v844
    %v847 = vmul.f32 %v732, %v844
    %v850 = vrot.slane %v847, 7
    %v851 = vsel %vm666, %v850, %v846
    %vm853 = vcmask 517120
    %v854 = vsel %vm853, %v851, 0.0
    %855 = vadd.xlane.f32.xlu0 %v854
    %v856 = vpop.xlane.xlu0 %855
    %v857 = vld [vmem:[%s53] sm:$0x1]
    %v859 = vperm.slane %v857, 0
    %860 = vrot.lane.b32.xlu0 %v859, 96
    %v861 = vpop.permute.xlu0 %860
    %v863 = vmul.f32 %v548, %v861
    %v864 = vld [vmem:[%s55] sm:$0x1]
    %v866 = vperm.slane %v864, 0
    %867 = vrot.lane.b32.xlu0 %v866, 32
    %v868 = vpop.permute.xlu0 %867
    %v870 = vmul.f32 %v542, %v868
    %872 = vrot.lane.b32.xlu0 %v870, 64
    %v873 = vpop.permute.xlu0 %872
    %v875 = vadd.f32 %v863, %v873
    %877 = vrot.lane.b32.xlu0 %v875, 32
    %v878 = vpop.permute.xlu0 %877
    %vm880 = vcmask 254976
    %v881 = vsel %vm880, %v878, 0.0
    %882 = vadd.xlane.f32.xlu0 %v881
    %v883 = vpop.xlane.xlu0 %882
    %v884 = vadd.f32 %v856, %v883
    %v885 = vld [vmem:[%s57] sm:$0x1]
    %v887 = vperm.slane %v885, 0
    %v889 = vmul.f32 %v379, %v887
    %v890 = vsel %vm880, %v889, 0.0
    %891 = vadd.xlane.f32.xlu0 %v890
    %v892 = vpop.xlane.xlu0 %891
    %v893 = vadd.f32 %v884, %v892
    %v894 = vxor.u32 %v893, 2147483648
    %v895 = vmul.f32 %v894, 1.442695
    %v896 = vpow.pop %v895
    %v897 = vadd.f32 %v896, 1.0
    %v898 = vrcp.pop %v897
    %v899 = vmul.f32 %v897, %v898
    %v900 = vsub.f32 1.0, %v899
    %v901 = vmul.f32 %v898, %v900
    %v902 = vadd.f32 %v898, %v901
    %vm903 = vweird.f32 %v897
    %vm904 = vweird.f32 %v898
    %vm905 = vmor %vm903, %vm904
    %v906 = vsel %vm905, %v898, %v902
    %v907 = vand.u32 2147483647, %v897
    %vm908 = vcmp.eq.f32.partialorder %v907, 8.507059e+37
    %v909 = vand.u32 %v897, 2147483648
    %v910 = vor.u32 1.1754944e-38, %v909
    %v911 = vsel %vm908, %v910, %v906
    %v912 = vmul.f32 1.0, %v911
    %v913 = vsub.f32 1.0, %v912
    %v914 = vperm.slane %v710, %v663
    %v915 = vperm.slane %v715, %v663
    %v916 = vsel %vm666, %v915, %v914
    %v918 = vmul.f32 %v913, %v916
    %v919 = vmul.f32 %v912, %v841
    %v920 = vld [vmem:[#allocation7] sm:$0x3]
    %v921 = vperm.slane %v920, 0
    %v922 = vlaneseq
    %v923 = vshrl.u32 %v922, 7
    %925 = vset.pattern.permute.xlu0 %v923
    %926 = vperm.xlu0 %925, %v921
    %v927 = vpop.permute.xlu0 %926
    %v928 = vperm.slane %v920, 1
    %v929 = vlaneseq
    %v930 = vshrl.u32 %v929, 7
    %932 = vset.pattern.permute.xlu0 %v930
    %933 = vperm.xlu0 %932, %v928
    %v934 = vpop.permute.xlu0 %933
    %vm935 = vcmp.eq.s32.totalorder %v663, %v927
    %vm936 = vcmp.eq.s32.totalorder %v663, %v934
    %v937 = vperm.slane %v918, 0
    %v938 = vlaneseq
    %v939 = vshrl.u32 %v938, 7
    %941 = vset.pattern.permute.xlu0 %v939
    %942 = vperm.xlu0 %941, %v937
    %v943 = vpop.permute.xlu0 %942
    %v944 = vperm.slane %v918, 1
    %v945 = vlaneseq
    %v946 = vshrl.u32 %v945, 7
    %948 = vset.pattern.permute.xlu0 %v946
    %949 = vperm.xlu0 %948, %v944
    %v950 = vpop.permute.xlu0 %949
    %v951 = vsel %vm935, %v943, 0.0
    %v952 = vsel %vm936, %v950, 0.0
    %v953 = vrot.slane %v951, 4
    %v954 = vadd.f32 %v951, %v953
    %v955 = vrot.slane %v954, 2
    %v956 = vadd.f32 %v954, %v955
    %v957 = vrot.slane %v956, 1
    %v958 = vadd.f32 %v956, %v957
    %v959 = vrot.slane %v952, 4
    %v960 = vadd.f32 %v952, %v959
    %v961 = vrot.slane %v960, 2
    %v962 = vadd.f32 %v960, %v961
    %v963 = vrot.slane %v962, 1
    %v964 = vadd.f32 %v962, %v963
    %v967 = vsel %vm666, %v964, %v958
    %v969 = vadd.f32 %v919, %v967
    %970 = vst [vmem:[#allocation29] sm:$0x3] %v969
    %972 = vst.msk [vmem:[#allocation30] sm:$0x3] %vm880, %v586
    %974 = vst.msk [vmem:[#allocation32] sm:$0x3] %vm880, %v561
    %976 = vst.msk [vmem:[#allocation33] sm:$0x3] %vm853, %v767
    %v977 = vadd.f32 %v383, %v916
    %978 = vst.msk [vmem:[#allocation35] sm:$0x3] %vm669, %v977
    // Predicated region
    $region186: #{tpu_custom_call.1} parent=1 // pred_check
      _
    $region187: #{tpu_custom_call.1} parent=1 // pred_check_branch
      %980 = sbr.rel (0) target = $region189
    $region188: #{tpu_custom_call.1} parent=1 // pred_region
      %982 = vsyncadd [#allocation4], 0
      %s984 = sshll.u32 [#allocation29], 4
      %s985 = int_to_ptr.vmem [resolvable:$true] %s984
      %s986 = sshll.u32 %s59, 4
      %s987 = int_to_ptr.hbm [resolvable:$true] %s986
      %989 = dma.vmem_to_hbm [thread:$0]  %s985, 32, %s987, [#allocation4]
    $region189: #{tpu_custom_call.1} parent=1 // pred_fallthru
      _
    // Predicated region
    $region190: #{tpu_custom_call.1} parent=1 // pred_check
      _
    $region191: #{tpu_custom_call.1} parent=1 // pred_check_branch
      %991 = sbr.rel (0) target = $region193
    $region192: #{tpu_custom_call.1} parent=1 // pred_region
      %993 = vsyncadd [#allocation31], 0
      %s995 = sshll.u32 [#allocation30], 4
      %s996 = int_to_ptr.vmem [resolvable:$true] %s995
      %s997 = sshll.u32 %s61, 4
      %s998 = int_to_ptr.hbm [resolvable:$true] %s997
      %1000 = dma.vmem_to_hbm [thread:$0]  %s996, 32, %s998, [#allocation31]
    $region193: #{tpu_custom_call.1} parent=1 // pred_fallthru
      _
    // Predicated region
    $region194: #{tpu_custom_call.1} parent=1 // pred_check
      _
    $region195: #{tpu_custom_call.1} parent=1 // pred_check_branch
      %1002 = sbr.rel (0) target = $region197
    $region196: #{tpu_custom_call.1} parent=1 // pred_region
      %1004 = vsyncadd [#allocation31], 0
      %s1006 = sshll.u32 [#allocation32], 4
      %s1007 = int_to_ptr.vmem [resolvable:$true] %s1006
      %s1008 = sshll.u32 %s63, 4
      %s1009 = int_to_ptr.hbm [resolvable:$true] %s1008
      %1011 = dma.vmem_to_hbm [thread:$0]  %s1007, 32, %s1009, [#allocation31]
    $region197: #{tpu_custom_call.1} parent=1 // pred_fallthru
      _
    // Predicated region
    $region198: #{tpu_custom_call.1} parent=1 // pred_check
      _
    $region199: #{tpu_custom_call.1} parent=1 // pred_check_branch
      %1013 = sbr.rel (0) target = $region201
    $region200: #{tpu_custom_call.1} parent=1 // pred_region
      %1015 = vsyncadd [#allocation34], 0
      %s1017 = sshll.u32 [#allocation33], 4
      %s1018 = int_to_ptr.vmem [resolvable:$true] %s1017
      %s1019 = sshll.u32 %s65, 4
      %s1020 = int_to_ptr.hbm [resolvable:$true] %s1019
      %1022 = dma.vmem_to_hbm [thread:$0]  %s1018, 32, %s1020, [#allocation34]
    $region201: #{tpu_custom_call.1} parent=1 // pred_fallthru
      _
    // Predicated region
    $region202: #{tpu_custom_call.1} parent=1 // pred_check
      _
    $region203: #{tpu_custom_call.1} parent=1 // pred_check_branch
      %1024 = sbr.rel (0) target = $region205
    $region204: #{tpu_custom_call.1} parent=1 // pred_region
      %1026 = vsyncadd [#allocation34], 0
      %s1028 = sshll.u32 [#allocation35], 4
      %s1029 = int_to_ptr.vmem [resolvable:$true] %s1028
      %s1030 = sshll.u32 %s67, 4
      %s1031 = int_to_ptr.hbm [resolvable:$true] %s1030
      %1033 = dma.vmem_to_hbm [thread:$0]  %s1029, 32, %s1031, [#allocation34]
    $region205: #{tpu_custom_call.1} parent=1 // pred_fallthru
      _
    // Predicated region
    $region206: #{tpu_custom_call.1} parent=1 // pred_check
      _
    $region207: #{tpu_custom_call.1} parent=1 // pred_check_branch
      %1035 = sbr.rel (0) target = $region209
    $region208: #{tpu_custom_call.1} parent=1 // pred_region
      %1037 = dma.done [#allocation4], 32
    $region209: #{tpu_custom_call.1} parent=1 // pred_fallthru
      _
    // Predicated region
    $region210: #{tpu_custom_call.1} parent=1 // pred_check
      _
    $region211: #{tpu_custom_call.1} parent=1 // pred_check_branch
      %1039 = sbr.rel (0) target = $region213
    $region212: #{tpu_custom_call.1} parent=1 // pred_region
      %1041 = dma.done [#allocation31], 32
    $region213: #{tpu_custom_call.1} parent=1 // pred_fallthru
      _
    // Predicated region
    $region214: #{tpu_custom_call.1} parent=1 // pred_check
      _
    $region215: #{tpu_custom_call.1} parent=1 // pred_check_branch
      %1043 = sbr.rel (0) target = $region217
    $region216: #{tpu_custom_call.1} parent=1 // pred_region
      %1045 = dma.done [#allocation31], 32
    $region217: #{tpu_custom_call.1} parent=1 // pred_fallthru
      _
    // Predicated region
    $region218: #{tpu_custom_call.1} parent=1 // pred_check
      _
    $region219: #{tpu_custom_call.1} parent=1 // pred_check_branch
      %1047 = sbr.rel (0) target = $region221
    $region220: #{tpu_custom_call.1} parent=1 // pred_region
      %1049 = dma.done [#allocation34], 32
    $region221: #{tpu_custom_call.1} parent=1 // pred_fallthru
      _
    // Predicated region
    $region222: #{tpu_custom_call.1} parent=1 // pred_check
      _
    $region223: #{tpu_custom_call.1} parent=1 // pred_check_branch
      %1051 = sbr.rel (0) target = $region225
    $region224: #{tpu_custom_call.1} parent=1 // pred_region
      %1053 = dma.done [#allocation34], 32
    $region225: #{tpu_custom_call.1} parent=1 // pred_fallthru
      _
    %1054 = vsyncpa [#allocation3], 1
    %1055 = vsyncpa [#allocation6], 1
    %1056 = vsyncpa [#allocation9], 1
    %1057 = vsyncpa [#allocation12], 1
    %1058 = vsyncpa [#allocation15], 1
    %1059 = vsyncpa [#allocation18], 1
    %1060 = vsyncpa [#allocation21], 1
    %1061 = vsyncpa [#allocation24], 1
    %1062 = vsyncpa [#allocation27], 1
    %1063 = vsyncpa [#allocation4], 1
    %1064 = vsyncpa [#allocation31], 1
    %1065 = vsyncpa [#allocation34], 1

</llo_original>
